<compile_context>
chip_gen: v7x
topology: tpu7x:2x2x1
jax: 0.10.0
libtpu: 0.0.40
codegen_flags: <defaults>
</compile_context>

<pallas_src>
import numpy as np

import jax
import jax.numpy as jnp
from jax import lax
from jax.experimental import pallas as pl
from jax.experimental.pallas import tpu as pltpu

BN_EPS = 1e-5  # PyTorch BatchNorm2d default


# ---------------------------------------------------------------------------
# Constant / weight preparation (all tiny; weights-only, never activations)
# ---------------------------------------------------------------------------
def _pool_selectors(n_img, w_in, cin):
    """0/1 matrices selecting the even / odd width taps of a 2x2 max-pool.

    Input lanes:  n*w_in*cin + w*cin + c          (w in [0, w_in))
    Output lanes: n*(w_in//2)*cin + x*cin + c     (x in [0, w_in//2))
    """
    w_out = w_in // 2
    te = np.zeros((n_img * w_in * cin, n_img * w_out * cin), np.float32)
    to = np.zeros_like(te)
    for n in range(n_img):
        for x in range(w_out):
            for c in range(cin):
                m = (n * w_out + x) * cin + c
                te[(n * w_in + 2 * x) * cin + c, m] = 1.0
                to[(n * w_in + 2 * x + 1) * cin + c, m] = 1.0
    return jnp.asarray(te), jnp.asarray(to)


def _channel_selector(n_img, w_out, cout):
    """0/1 matrix mapping lane n*w_out*cout + x*cout + co -> channel co."""
    return np.tile(np.eye(cout, dtype=np.float32), (n_img * w_out, 1))


def _banded_conv_weights(w, w_in, w_out, n_img):
    """(Cout,Cin,KH,KW) -> (KH, n*w_in*Cin, n*w_out*Cout) block-diag banded mats.

    B[dy] folds the width taps (dx) and the channel contraction of a valid
    3x3 conv into one matmul RHS, block-diagonal over the images, so
        out[y] = sum_dy  act_rows[y+dy] @ B[dy]
    is exactly the valid convolution in the (row=height, lane=(n,x,c)) layout.
    """
    cout, cin, kh, kw = w.shape
    wr = jnp.transpose(w, (2, 3, 1, 0))                      # (KH, KW, Cin, Cout)
    band = jnp.zeros((kh, w_in * cin, w_out * cout), w.dtype)
    for x in range(w_out):
        for dx in range(kw):
            band = band.at[:, (x + dx) * cin:(x + dx + 1) * cin,
                              x * cout:(x + 1) * cout].set(wr[:, dx])
    full = jnp.zeros((kh, n_img * w_in * cin, n_img * w_out * cout), w.dtype)
    for n in range(n_img):
        full = full.at[:, n * w_in * cin:(n + 1) * w_in * cin,
                          n * w_out * cout:(n + 1) * w_out * cout].set(band)
    return full


def _vspec(shape):
    # whole-array VMEM block (single fused invocation)
    return pl.BlockSpec(shape, lambda *_: (0,) * len(shape))


# ---------------------------------------------------------------------------
# Fused Pallas kernel: maxpool -> conv1 -> BN1 -> ReLU -> conv2 -> BN2 -> ReLU
# ---------------------------------------------------------------------------
def _make_encoder_kernel(n_img, cin, h, w, cout):
    hp, wp = h // 2, w // 2          # pooled spatial
    ho1, wo1 = hp - 2, wp - 2        # conv1 (valid 3x3)
    ho2, wo2 = ho1 - 2, wo1 - 2      # conv2 (valid 3x3)
    l0 = n_img * w * cin             # lanes before horizontal pool
    cnt1 = float(n_img * ho1 * wo1)  # BN1 element count per channel
    cnt2 = float(n_img * ho2 * wo2)  # BN2 element count per channel

    def kernel(x_ref, te_ref, to_ref, b1_ref, b2_ref,
               p1_ref, p1t_ref, p2_ref, p2t_ref, bn_ref,
               o_ref, pool_s, h1_s):
        # ---- MaxPool2d(2, 2): vertical pair = the two lane halves of each row,
        #      horizontal pair via exact 0/1 selection matmuls.
        vert = jnp.maximum(x_ref[:, 0:l0], x_ref[:, l0:2 * l0])       # (hp, l0)
        pool_s[...] = jnp.maximum(
            jnp.dot(vert, te_ref[...], preferred_element_type=jnp.float32),
            jnp.dot(vert, to_ref[...], preferred_element_type=jnp.float32))

        # ---- conv1: implicit im2col = 3 row-shifted matmuls (banded weights).
        # NOTE: conv bias intentionally omitted -- training-mode BN subtracts
        # the per-channel mean right after, so a constant bias cancels exactly.
        y1 = jnp.dot(pool_s[0:ho1, :], b1_ref[0],
                     preferred_element_type=jnp.float32)
        for dy in (1, 2):
            y1 = y1 + jnp.dot(pool_s[dy:dy + ho1, :], b1_ref[dy],
                              preferred_element_type=jnp.float32)

        # ---- BN1 (biased batch stats over N,H,W) + ReLU, folded into one FMA.
        mean1 = jnp.dot(jnp.sum(y1, axis=0, keepdims=True), p1_ref[...],
                        preferred_element_type=jnp.float32) / cnt1     # (1, Cout)
        mean1b = jnp.dot(mean1, p1t_ref[...], preferred_element_type=jnp.float32)
        var1 = jnp.dot(jnp.sum((y1 - mean1b) ** 2, axis=0, keepdims=True),
                       p1_ref[...], preferred_element_type=jnp.float32) / cnt1
        scale1 = bn_ref[0:1, :] * lax.rsqrt(var1 + BN_EPS)
        shift1 = bn_ref[1:2, :] - mean1 * scale1
        scale1b = jnp.dot(scale1, p1t_ref[...], preferred_element_type=jnp.float32)
        shift1b = jnp.dot(shift1, p1t_ref[...], preferred_element_type=jnp.float32)
        h1_s[...] = jnp.maximum(y1 * scale1b + shift1b, 0.0)

        # ---- conv2 (same implicit-im2col structure, Cin = Cout of layer 1).
        y2 = jnp.dot(h1_s[0:ho2, :], b2_ref[0],
                     preferred_element_type=jnp.float32)
        for dy in (1, 2):
            y2 = y2 + jnp.dot(h1_s[dy:dy + ho2, :], b2_ref[dy],
                              preferred_element_type=jnp.float32)

        # ---- BN2 + ReLU, store.
        mean2 = jnp.dot(jnp.sum(y2, axis=0, keepdims=True), p2_ref[...],
                        preferred_element_type=jnp.float32) / cnt2
        mean2b = jnp.dot(mean2, p2t_ref[...], preferred_element_type=jnp.float32)
        var2 = jnp.dot(jnp.sum((y2 - mean2b) ** 2, axis=0, keepdims=True),
                       p2_ref[...], preferred_element_type=jnp.float32) / cnt2
        scale2 = bn_ref[2:3, :] * lax.rsqrt(var2 + BN_EPS)
        shift2 = bn_ref[3:4, :] - mean2 * scale2
        scale2b = jnp.dot(scale2, p2t_ref[...], preferred_element_type=jnp.float32)
        shift2b = jnp.dot(shift2, p2t_ref[...], preferred_element_type=jnp.float32)
        o_ref[...] = jnp.maximum(y2 * scale2b + shift2b, 0.0)

    return kernel, (hp, wp, ho1, wo1, ho2, wo2)


# ---------------------------------------------------------------------------
# Wrapper: layout prep (one transpose + contiguous reshapes, weights only
# expansion) and the single fused pallas_call.
# ---------------------------------------------------------------------------
def encoder_block_forward(x_nchw, params):
    N, Cin, H, W = x_nchw.shape
    Cout = params["w1"].shape[0]
    assert H % 2 == 0 and W % 2 == 0 and H // 2 >= 5 and W // 2 >= 5

    kernel, (Hp, Wp, Ho1, Wo1, Ho2, Wo2) = _make_encoder_kernel(N, Cin, H, W, Cout)

    # Input layout: rows = pooled-height pairs, lanes = (y-parity, image, x, cin)
    xr = jnp.transpose(x_nchw, (2, 0, 3, 1)).reshape(Hp, 2 * N * W * Cin)

    te, to = _pool_selectors(N, W, Cin)
    b1 = _banded_conv_weights(params["w1"], Wp, Wo1, N)     # (3, N*Wp*Cin, N*Wo1*Cout)
    b2 = _banded_conv_weights(params["w2"], Wo1, Wo2, N)    # (3, N*Wo1*Cout, N*Wo2*Cout)
    p1_np = _channel_selector(N, Wo1, Cout)
    p2_np = _channel_selector(N, Wo2, Cout)
    p1, p1t = jnp.asarray(p1_np), jnp.asarray(p1_np.T)
    p2, p2t = jnp.asarray(p2_np), jnp.asarray(p2_np.T)
    bn = jnp.stack([params["g1"], params["beta1"],
                    params["g2"], params["beta2"]]).astype(jnp.float32)  # (4, Cout)

    in_arrays = (xr, te, to, b1, b2, p1, p1t, p2, p2t, bn)
    out = pl.pallas_call(
        kernel,
        grid=(1,),
        out_shape=jax.ShapeDtypeStruct((Ho2, N * Wo2 * Cout), jnp.float32),
        in_specs=[_vspec(a.shape) for a in in_arrays],
        out_specs=_vspec((Ho2, N * Wo2 * Cout)),
        scratch_shapes=[pltpu.VMEM((Hp, N * Wp * Cin), jnp.float32),      # pooled
                        pltpu.VMEM((Ho1, N * Wo1 * Cout), jnp.float32)],  # relu(bn1)
        compiler_params=pltpu.CompilerParams(
            dimension_semantics=("arbitrary",),
            # explicit limit (well under v7x's 64 MiB / 32 MiB scoped default)
            vmem_limit_bytes=32 * 1024 * 1024),
    )(*in_arrays)

    # (Ho2, N*Wo2*Cout) -> NCHW
    return jnp.transpose(out.reshape(Ho2, N, Wo2, Cout), (1, 3, 0, 2))


# ---------------------------------------------------------------------------
# Pure-JAX reference (correctness check only; includes the conv bias to show
# the training-mode-BN cancellation holds numerically)
# ---------------------------------------------------------------------------
def ref_forward(x, p):
    pooled = lax.reduce_window(x, -jnp.inf, lax.max,
                               (1, 1, 2, 2), (1, 1, 2, 2), "VALID")

    def block(h, w, b, g, bt):
        y = lax.conv_general_dilated(h, w, (1, 1), "VALID",
                                     dimension_numbers=("NCHW", "OIHW", "NCHW"))
        y = y + b[None, :, None, None]
        mean = y.mean(axis=(0, 2, 3), keepdims=True)
        var = ((y - mean) ** 2).mean(axis=(0, 2, 3), keepdims=True)
        yh = (y - mean) / jnp.sqrt(var + BN_EPS)
        return jnp.maximum(yh * g[None, :, None, None] + bt[None, :, None, None], 0.0)

    h = block(pooled, p["w1"], p["b1"], p["g1"], p["beta1"])
    h = block(h, p["w2"], p["b2"], p["g2"], p["beta2"])
    return h


# ---------------------------------------------------------------------------
if __name__ == "__main__":
    key = jax.random.PRNGKey(0)
    N, Cin, Cout, H, W = 2, 4, 8, 16, 16
    keys = jax.random.split(key, 9)

    x = jax.random.normal(keys[0], (N, Cin, H, W), jnp.float32)
    params = dict(
        w1=0.1 * jax.random.normal(keys[1], (Cout, Cin, 3, 3), jnp.float32),
        b1=0.1 * jax.random.normal(keys[2], (Cout,), jnp.float32),
        g1=1.0 + 0.1 * jax.random.normal(keys[3], (Cout,), jnp.float32),
        beta1=0.1 * jax.random.normal(keys[4], (Cout,), jnp.float32),
        w2=0.1 * jax.random.normal(keys[5], (Cout, Cout, 3, 3), jnp.float32),
        b2=0.1 * jax.random.normal(keys[6], (Cout,), jnp.float32),
        g2=1.0 + 0.1 * jax.random.normal(keys[7], (Cout,), jnp.float32),
        beta2=0.1 * jax.random.normal(keys[8], (Cout,), jnp.float32),
    )

    out = jax.jit(encoder_block_forward)(x, params)
    out = jax.block_until_ready(out)

    # shape check: 16 -> pool 8 -> valid conv 6 -> valid conv 4
    assert out.shape == (N, Cout, 4, 4), out.shape

    ref = ref_forward(x, params)
    assert jnp.allclose(out, ref, atol=1e-4, rtol=1e-4), \
        float(jnp.max(jnp.abs(out - ref)))

    print("KERNEL_OK")
</pallas_src>

<mosaic_0001>
module attributes {stable_mosaic.version = 11 : i64} {
  func.func @kernel(%arg0: i32, %arg1: memref<8x256xf32, #tpu.memory_space<vmem>>, %arg2: memref<128x64xf32, #tpu.memory_space<vmem>>, %arg3: memref<128x64xf32, #tpu.memory_space<vmem>>, %arg4: memref<3x64x96xf32, #tpu.memory_space<vmem>>, %arg5: memref<3x96x64xf32, #tpu.memory_space<vmem>>, %arg6: memref<96x8xf32, #tpu.memory_space<vmem>>, %arg7: memref<8x96xf32, #tpu.memory_space<vmem>>, %arg8: memref<64x8xf32, #tpu.memory_space<vmem>>, %arg9: memref<8x64xf32, #tpu.memory_space<vmem>>, %arg10: memref<4x8xf32, #tpu.memory_space<vmem>>, %arg11: memref<4x64xf32, #tpu.memory_space<vmem>>, %arg12: memref<8x64xf32, #tpu.memory_space<vmem>>, %arg13: memref<6x96xf32, #tpu.memory_space<vmem>>) attributes {dimension_semantics = [#tpu.dimension_semantics<arbitrary>], iteration_bounds = array<i64: 1>, scalar_prefetch = 0 : i64, scratch_operands = 2 : i64, tpu.core_type = #tpu.core_type<tc>, window_params = [{pipeline_mode = #tpu.pipeline_mode<synchronous>, transform_indices = @transform_0, window_bounds = array<i64: 8, 256>}, {pipeline_mode = #tpu.pipeline_mode<synchronous>, transform_indices = @transform_1, window_bounds = array<i64: 128, 64>}, {pipeline_mode = #tpu.pipeline_mode<synchronous>, transform_indices = @transform_2, window_bounds = array<i64: 128, 64>}, {pipeline_mode = #tpu.pipeline_mode<synchronous>, transform_indices = @transform_3, window_bounds = array<i64: 3, 64, 96>}, {pipeline_mode = #tpu.pipeline_mode<synchronous>, transform_indices = @transform_4, window_bounds = array<i64: 3, 96, 64>}, {pipeline_mode = #tpu.pipeline_mode<synchronous>, transform_indices = @transform_5, window_bounds = array<i64: 96, 8>}, {pipeline_mode = #tpu.pipeline_mode<synchronous>, transform_indices = @transform_6, window_bounds = array<i64: 8, 96>}, {pipeline_mode = #tpu.pipeline_mode<synchronous>, transform_indices = @transform_7, window_bounds = array<i64: 64, 8>}, {pipeline_mode = #tpu.pipeline_mode<synchronous>, transform_indices = @transform_8, window_bounds = array<i64: 8, 64>}, {pipeline_mode = #tpu.pipeline_mode<synchronous>, transform_indices = @transform_9, window_bounds = array<i64: 4, 8>}, {pipeline_mode = #tpu.pipeline_mode<synchronous>, transform_indices = @transform_10, window_bounds = array<i64: 4, 64>}]} {
    %c0 = arith.constant 0 : index
    %c0_0 = arith.constant 0 : index
    %0 = vector.load %arg1[%c0, %c0_0] : memref<8x256xf32, #tpu.memory_space<vmem>>, vector<8x128xf32>
    %c0_1 = arith.constant 0 : index
    %c128 = arith.constant 128 : index
    %1 = vector.load %arg1[%c0_1, %c128] : memref<8x256xf32, #tpu.memory_space<vmem>>, vector<8x128xf32>
    %2 = arith.maximumf %0, %1 : vector<8x128xf32>
    %c0_2 = arith.constant 0 : index
    %c0_3 = arith.constant 0 : index
    %3 = vector.load %arg2[%c0_2, %c0_3] : memref<128x64xf32, #tpu.memory_space<vmem>>, vector<128x64xf32>
    %cst = arith.constant dense<0.000000e+00> : vector<8x64xf32>
    %4 = tpu.matmul %2, %3, %cst {dimension_numbers = #tpu.dot_dimension_numbers<[1], [0], [0], [1], [0, 0, 1, 1], [], []>} : vector<8x128xf32>, vector<128x64xf32>, vector<8x64xf32> -> vector<8x64xf32>
    %c0_4 = arith.constant 0 : index
    %c0_5 = arith.constant 0 : index
    %5 = vector.load %arg3[%c0_4, %c0_5] : memref<128x64xf32, #tpu.memory_space<vmem>>, vector<128x64xf32>
    %cst_6 = arith.constant dense<0.000000e+00> : vector<8x64xf32>
    %6 = tpu.matmul %2, %5, %cst_6 {dimension_numbers = #tpu.dot_dimension_numbers<[1], [0], [0], [1], [0, 0, 1, 1], [], []>} : vector<8x128xf32>, vector<128x64xf32>, vector<8x64xf32> -> vector<8x64xf32>
    %7 = arith.maximumf %4, %6 : vector<8x64xf32>
    %c0_7 = arith.constant 0 : index
    %c0_8 = arith.constant 0 : index
    %8 = vector.load %arg12[%c0_7, %c0_8] : memref<8x64xf32, #tpu.memory_space<vmem>>, vector<8x64xf32>
    tpu.vector_store %arg12[%c0_7, %c0_8], %7 {strides = array<i32>} : memref<8x64xf32, #tpu.memory_space<vmem>>, vector<8x64xf32>,
    %c0_9 = arith.constant 0 : index
    %c0_10 = arith.constant 0 : index
    %9 = vector.load %arg12[%c0_9, %c0_10] : memref<8x64xf32, #tpu.memory_space<vmem>>, vector<6x64xf32>
    %c0_11 = arith.constant 0 : index
    %c0_12 = arith.constant 0 : index
    %c0_13 = arith.constant 0 : index
    %10 = vector.load %arg4[%c0_11, %c0_12, %c0_13] : memref<3x64x96xf32, #tpu.memory_space<vmem>>, vector<1x64x96xf32>
    %11 = vector.shape_cast %10 : vector<1x64x96xf32> to vector<64x96xf32>
    %cst_14 = arith.constant dense<0.000000e+00> : vector<6x96xf32>
    %12 = tpu.matmul %9, %11, %cst_14 {dimension_numbers = #tpu.dot_dimension_numbers<[1], [0], [0], [1], [0, 0, 1, 1], [], []>} : vector<6x64xf32>, vector<64x96xf32>, vector<6x96xf32> -> vector<6x96xf32>
    %c1 = arith.constant 1 : index
    %c0_15 = arith.constant 0 : index
    %13 = vector.load %arg12[%c1, %c0_15] : memref<8x64xf32, #tpu.memory_space<vmem>>, vector<6x64xf32>
    %c1_16 = arith.constant 1 : index
    %c0_17 = arith.constant 0 : index
    %c0_18 = arith.constant 0 : index
    %14 = vector.load %arg4[%c1_16, %c0_17, %c0_18] : memref<3x64x96xf32, #tpu.memory_space<vmem>>, vector<1x64x96xf32>
    %15 = vector.shape_cast %14 : vector<1x64x96xf32> to vector<64x96xf32>
    %cst_19 = arith.constant dense<0.000000e+00> : vector<6x96xf32>
    %16 = tpu.matmul %13, %15, %cst_19 {dimension_numbers = #tpu.dot_dimension_numbers<[1], [0], [0], [1], [0, 0, 1, 1], [], []>} : vector<6x64xf32>, vector<64x96xf32>, vector<6x96xf32> -> vector<6x96xf32>
    %17 = arith.addf %12, %16 : vector<6x96xf32>
    %c2 = arith.constant 2 : index
    %c0_20 = arith.constant 0 : index
    %18 = vector.load %arg12[%c2, %c0_20] : memref<8x64xf32, #tpu.memory_space<vmem>>, vector<6x64xf32>
    %c2_21 = arith.constant 2 : index
    %c0_22 = arith.constant 0 : index
    %c0_23 = arith.constant 0 : index
    %19 = vector.load %arg4[%c2_21, %c0_22, %c0_23] : memref<3x64x96xf32, #tpu.memory_space<vmem>>, vector<1x64x96xf32>
    %20 = vector.shape_cast %19 : vector<1x64x96xf32> to vector<64x96xf32>
    %cst_24 = arith.constant dense<0.000000e+00> : vector<6x96xf32>
    %21 = tpu.matmul %18, %20, %cst_24 {dimension_numbers = #tpu.dot_dimension_numbers<[1], [0], [0], [1], [0, 0, 1, 1], [], []>} : vector<6x64xf32>, vector<64x96xf32>, vector<6x96xf32> -> vector<6x96xf32>
    %22 = arith.addf %17, %21 : vector<6x96xf32>
    %cst_25 = arith.constant dense<0.000000e+00> : vector<96xf32>
    %23 = vector.multi_reduction <add>, %22, %cst_25 [0] : vector<6x96xf32> to vector<96xf32>
    %24 = vector.shape_cast %23 : vector<96xf32> to vector<1x96xf32>
    %c0_26 = arith.constant 0 : index
    %c0_27 = arith.constant 0 : index
    %25 = vector.load %arg6[%c0_26, %c0_27] : memref<96x8xf32, #tpu.memory_space<vmem>>, vector<96x8xf32>
    %cst_28 = arith.constant dense<0.000000e+00> : vector<1x8xf32>
    %26 = tpu.matmul %24, %25, %cst_28 {dimension_numbers = #tpu.dot_dimension_numbers<[1], [0], [0], [1], [0, 0, 1, 1], [], []>} : vector<1x96xf32>, vector<96x8xf32>, vector<1x8xf32> -> vector<1x8xf32>
    %cst_29 = arith.constant 7.200000e+01 : f32
    %27 = vector.broadcast %cst_29 : f32 to vector<1x8xf32>
    %28 = arith.divf %26, %27 : vector<1x8xf32>
    %c0_30 = arith.constant 0 : index
    %c0_31 = arith.constant 0 : index
    %29 = vector.load %arg7[%c0_30, %c0_31] : memref<8x96xf32, #tpu.memory_space<vmem>>, vector<8x96xf32>
    %cst_32 = arith.constant dense<0.000000e+00> : vector<1x96xf32>
    %30 = tpu.matmul %28, %29, %cst_32 {dimension_numbers = #tpu.dot_dimension_numbers<[1], [0], [0], [1], [0, 0, 1, 1], [], []>} : vector<1x8xf32>, vector<8x96xf32>, vector<1x96xf32> -> vector<1x96xf32>
    %31 = vector.broadcast %30 : vector<1x96xf32> to vector<6x96xf32>
    %32 = arith.subf %22, %31 : vector<6x96xf32>
    %33 = arith.mulf %32, %32 : vector<6x96xf32>
    %cst_33 = arith.constant dense<0.000000e+00> : vector<96xf32>
    %34 = vector.multi_reduction <add>, %33, %cst_33 [0] : vector<6x96xf32> to vector<96xf32>
    %35 = vector.shape_cast %34 : vector<96xf32> to vector<1x96xf32>
    %c0_34 = arith.constant 0 : index
    %c0_35 = arith.constant 0 : index
    %36 = vector.load %arg6[%c0_34, %c0_35] : memref<96x8xf32, #tpu.memory_space<vmem>>, vector<96x8xf32>
    %cst_36 = arith.constant dense<0.000000e+00> : vector<1x8xf32>
    %37 = tpu.matmul %35, %36, %cst_36 {dimension_numbers = #tpu.dot_dimension_numbers<[1], [0], [0], [1], [0, 0, 1, 1], [], []>} : vector<1x96xf32>, vector<96x8xf32>, vector<1x8xf32> -> vector<1x8xf32>
    %cst_37 = arith.constant 7.200000e+01 : f32
    %38 = vector.broadcast %cst_37 : f32 to vector<1x8xf32>
    %39 = arith.divf %37, %38 : vector<1x8xf32>
    %c0_38 = arith.constant 0 : index
    %c0_39 = arith.constant 0 : index
    %40 = vector.load %arg10[%c0_38, %c0_39] : memref<4x8xf32, #tpu.memory_space<vmem>>, vector<1x8xf32>
    %cst_40 = arith.constant 9.99999974E-6 : f32
    %41 = vector.broadcast %cst_40 : f32 to vector<1x8xf32>
    %42 = arith.addf %39, %41 : vector<1x8xf32>
    %43 = math.rsqrt %42 : vector<1x8xf32>
    %44 = arith.mulf %40, %43 : vector<1x8xf32>
    %c1_41 = arith.constant 1 : index
    %c0_42 = arith.constant 0 : index
    %45 = vector.load %arg10[%c1_41, %c0_42] : memref<4x8xf32, #tpu.memory_space<vmem>>, vector<1x8xf32>
    %46 = arith.mulf %28, %44 : vector<1x8xf32>
    %47 = arith.subf %45, %46 : vector<1x8xf32>
    %c0_43 = arith.constant 0 : index
    %c0_44 = arith.constant 0 : index
    %48 = vector.load %arg7[%c0_43, %c0_44] : memref<8x96xf32, #tpu.memory_space<vmem>>, vector<8x96xf32>
    %cst_45 = arith.constant dense<0.000000e+00> : vector<1x96xf32>
    %49 = tpu.matmul %44, %48, %cst_45 {dimension_numbers = #tpu.dot_dimension_numbers<[1], [0], [0], [1], [0, 0, 1, 1], [], []>} : vector<1x8xf32>, vector<8x96xf32>, vector<1x96xf32> -> vector<1x96xf32>
    %c0_46 = arith.constant 0 : index
    %c0_47 = arith.constant 0 : index
    %50 = vector.load %arg7[%c0_46, %c0_47] : memref<8x96xf32, #tpu.memory_space<vmem>>, vector<8x96xf32>
    %cst_48 = arith.constant dense<0.000000e+00> : vector<1x96xf32>
    %51 = tpu.matmul %47, %50, %cst_48 {dimension_numbers = #tpu.dot_dimension_numbers<[1], [0], [0], [1], [0, 0, 1, 1], [], []>} : vector<1x8xf32>, vector<8x96xf32>, vector<1x96xf32> -> vector<1x96xf32>
    %52 = vector.broadcast %49 : vector<1x96xf32> to vector<6x96xf32>
    %53 = arith.mulf %22, %52 : vector<6x96xf32>
    %54 = vector.broadcast %51 : vector<1x96xf32> to vector<6x96xf32>
    %55 = arith.addf %53, %54 : vector<6x96xf32>
    %cst_49 = arith.constant 0.000000e+00 : f32
    %56 = vector.broadcast %cst_49 : f32 to vector<6x96xf32>
    %57 = arith.maximumf %55, %56 : vector<6x96xf32>
    %c0_50 = arith.constant 0 : index
    %c0_51 = arith.constant 0 : index
    %58 = vector.load %arg13[%c0_50, %c0_51] : memref<6x96xf32, #tpu.memory_space<vmem>>, vector<6x96xf32>
    tpu.vector_store %arg13[%c0_50, %c0_51], %57 {strides = array<i32>} : memref<6x96xf32, #tpu.memory_space<vmem>>, vector<6x96xf32>,
    %c0_52 = arith.constant 0 : index
    %c0_53 = arith.constant 0 : index
    %59 = vector.load %arg13[%c0_52, %c0_53] : memref<6x96xf32, #tpu.memory_space<vmem>>, vector<4x96xf32>
    %c0_54 = arith.constant 0 : index
    %c0_55 = arith.constant 0 : index
    %c0_56 = arith.constant 0 : index
    %60 = vector.load %arg5[%c0_54, %c0_55, %c0_56] : memref<3x96x64xf32, #tpu.memory_space<vmem>>, vector<1x96x64xf32>
    %61 = vector.shape_cast %60 : vector<1x96x64xf32> to vector<96x64xf32>
    %cst_57 = arith.constant dense<0.000000e+00> : vector<4x64xf32>
    %62 = tpu.matmul %59, %61, %cst_57 {dimension_numbers = #tpu.dot_dimension_numbers<[1], [0], [0], [1], [0, 0, 1, 1], [], []>} : vector<4x96xf32>, vector<96x64xf32>, vector<4x64xf32> -> vector<4x64xf32>
    %c1_58 = arith.constant 1 : index
    %c0_59 = arith.constant 0 : index
    %63 = vector.load %arg13[%c1_58, %c0_59] : memref<6x96xf32, #tpu.memory_space<vmem>>, vector<4x96xf32>
    %c1_60 = arith.constant 1 : index
    %c0_61 = arith.constant 0 : index
    %c0_62 = arith.constant 0 : index
    %64 = vector.load %arg5[%c1_60, %c0_61, %c0_62] : memref<3x96x64xf32, #tpu.memory_space<vmem>>, vector<1x96x64xf32>
    %65 = vector.shape_cast %64 : vector<1x96x64xf32> to vector<96x64xf32>
    %cst_63 = arith.constant dense<0.000000e+00> : vector<4x64xf32>
    %66 = tpu.matmul %63, %65, %cst_63 {dimension_numbers = #tpu.dot_dimension_numbers<[1], [0], [0], [1], [0, 0, 1, 1], [], []>} : vector<4x96xf32>, vector<96x64xf32>, vector<4x64xf32> -> vector<4x64xf32>
    %67 = arith.addf %62, %66 : vector<4x64xf32>
    %c2_64 = arith.constant 2 : index
    %c0_65 = arith.constant 0 : index
    %68 = vector.load %arg13[%c2_64, %c0_65] : memref<6x96xf32, #tpu.memory_space<vmem>>, vector<4x96xf32>
    %c2_66 = arith.constant 2 : index
    %c0_67 = arith.constant 0 : index
    %c0_68 = arith.constant 0 : index
    %69 = vector.load %arg5[%c2_66, %c0_67, %c0_68] : memref<3x96x64xf32, #tpu.memory_space<vmem>>, vector<1x96x64xf32>
    %70 = vector.shape_cast %69 : vector<1x96x64xf32> to vector<96x64xf32>
    %cst_69 = arith.constant dense<0.000000e+00> : vector<4x64xf32>
    %71 = tpu.matmul %68, %70, %cst_69 {dimension_numbers = #tpu.dot_dimension_numbers<[1], [0], [0], [1], [0, 0, 1, 1], [], []>} : vector<4x96xf32>, vector<96x64xf32>, vector<4x64xf32> -> vector<4x64xf32>
    %72 = arith.addf %67, %71 : vector<4x64xf32>
    %cst_70 = arith.constant dense<0.000000e+00> : vector<64xf32>
    %73 = vector.multi_reduction <add>, %72, %cst_70 [0] : vector<4x64xf32> to vector<64xf32>
    %74 = vector.shape_cast %73 : vector<64xf32> to vector<1x64xf32>
    %c0_71 = arith.constant 0 : index
    %c0_72 = arith.constant 0 : index
    %75 = vector.load %arg8[%c0_71, %c0_72] : memref<64x8xf32, #tpu.memory_space<vmem>>, vector<64x8xf32>
    %cst_73 = arith.constant dense<0.000000e+00> : vector<1x8xf32>
    %76 = tpu.matmul %74, %75, %cst_73 {dimension_numbers = #tpu.dot_dimension_numbers<[1], [0], [0], [1], [0, 0, 1, 1], [], []>} : vector<1x64xf32>, vector<64x8xf32>, vector<1x8xf32> -> vector<1x8xf32>
    %cst_74 = arith.constant 3.200000e+01 : f32
    %77 = vector.broadcast %cst_74 : f32 to vector<1x8xf32>
    %78 = arith.divf %76, %77 : vector<1x8xf32>
    %c0_75 = arith.constant 0 : index
    %c0_76 = arith.constant 0 : index
    %79 = vector.load %arg9[%c0_75, %c0_76] : memref<8x64xf32, #tpu.memory_space<vmem>>, vector<8x64xf32>
    %cst_77 = arith.constant dense<0.000000e+00> : vector<1x64xf32>
    %80 = tpu.matmul %78, %79, %cst_77 {dimension_numbers = #tpu.dot_dimension_numbers<[1], [0], [0], [1], [0, 0, 1, 1], [], []>} : vector<1x8xf32>, vector<8x64xf32>, vector<1x64xf32> -> vector<1x64xf32>
    %81 = vector.broadcast %80 : vector<1x64xf32> to vector<4x64xf32>
    %82 = arith.subf %72, %81 : vector<4x64xf32>
    %83 = arith.mulf %82, %82 : vector<4x64xf32>
    %cst_78 = arith.constant dense<0.000000e+00> : vector<64xf32>
    %84 = vector.multi_reduction <add>, %83, %cst_78 [0] : vector<4x64xf32> to vector<64xf32>
    %85 = vector.shape_cast %84 : vector<64xf32> to vector<1x64xf32>
    %c0_79 = arith.constant 0 : index
    %c0_80 = arith.constant 0 : index
    %86 = vector.load %arg8[%c0_79, %c0_80] : memref<64x8xf32, #tpu.memory_space<vmem>>, vector<64x8xf32>
    %cst_81 = arith.constant dense<0.000000e+00> : vector<1x8xf32>
    %87 = tpu.matmul %85, %86, %cst_81 {dimension_numbers = #tpu.dot_dimension_numbers<[1], [0], [0], [1], [0, 0, 1, 1], [], []>} : vector<1x64xf32>, vector<64x8xf32>, vector<1x8xf32> -> vector<1x8xf32>
    %cst_82 = arith.constant 3.200000e+01 : f32
    %88 = vector.broadcast %cst_82 : f32 to vector<1x8xf32>
    %89 = arith.divf %87, %88 : vector<1x8xf32>
    %c2_83 = arith.constant 2 : index
    %c0_84 = arith.constant 0 : index
    %90 = vector.load %arg10[%c2_83, %c0_84] : memref<4x8xf32, #tpu.memory_space<vmem>>, vector<1x8xf32>
    %cst_85 = arith.constant 9.99999974E-6 : f32
    %91 = vector.broadcast %cst_85 : f32 to vector<1x8xf32>
    %92 = arith.addf %89, %91 : vector<1x8xf32>
    %93 = math.rsqrt %92 : vector<1x8xf32>
    %94 = arith.mulf %90, %93 : vector<1x8xf32>
    %c3 = arith.constant 3 : index
    %c0_86 = arith.constant 0 : index
    %95 = vector.load %arg10[%c3, %c0_86] : memref<4x8xf32, #tpu.memory_space<vmem>>, vector<1x8xf32>
    %96 = arith.mulf %78, %94 : vector<1x8xf32>
    %97 = arith.subf %95, %96 : vector<1x8xf32>
    %c0_87 = arith.constant 0 : index
    %c0_88 = arith.constant 0 : index
    %98 = vector.load %arg9[%c0_87, %c0_88] : memref<8x64xf32, #tpu.memory_space<vmem>>, vector<8x64xf32>
    %cst_89 = arith.constant dense<0.000000e+00> : vector<1x64xf32>
    %99 = tpu.matmul %94, %98, %cst_89 {dimension_numbers = #tpu.dot_dimension_numbers<[1], [0], [0], [1], [0, 0, 1, 1], [], []>} : vector<1x8xf32>, vector<8x64xf32>, vector<1x64xf32> -> vector<1x64xf32>
    %c0_90 = arith.constant 0 : index
    %c0_91 = arith.constant 0 : index
    %100 = vector.load %arg9[%c0_90, %c0_91] : memref<8x64xf32, #tpu.memory_space<vmem>>, vector<8x64xf32>
    %cst_92 = arith.constant dense<0.000000e+00> : vector<1x64xf32>
    %101 = tpu.matmul %97, %100, %cst_92 {dimension_numbers = #tpu.dot_dimension_numbers<[1], [0], [0], [1], [0, 0, 1, 1], [], []>} : vector<1x8xf32>, vector<8x64xf32>, vector<1x64xf32> -> vector<1x64xf32>
    %102 = vector.broadcast %99 : vector<1x64xf32> to vector<4x64xf32>
    %103 = arith.mulf %72, %102 : vector<4x64xf32>
    %104 = vector.broadcast %101 : vector<1x64xf32> to vector<4x64xf32>
    %105 = arith.addf %103, %104 : vector<4x64xf32>
    %cst_93 = arith.constant 0.000000e+00 : f32
    %106 = vector.broadcast %cst_93 : f32 to vector<4x64xf32>
    %107 = arith.maximumf %105, %106 : vector<4x64xf32>
    %c0_94 = arith.constant 0 : index
    %c0_95 = arith.constant 0 : index
    %108 = vector.load %arg11[%c0_94, %c0_95] : memref<4x64xf32, #tpu.memory_space<vmem>>, vector<4x64xf32>
    tpu.vector_store %arg11[%c0_94, %c0_95], %107 {strides = array<i32>} : memref<4x64xf32, #tpu.memory_space<vmem>>, vector<4x64xf32>,
    return
  }
  func.func @transform_0(%arg0: i32) -> (i32, i32) {
    %c0_i32 = arith.constant 0 : i32
    %c0_i32_0 = arith.constant 0 : i32
    %c0_i32_1 = arith.constant 0 : i32
    return %c0_i32, %c0_i32_0 : i32, i32
  }
  func.func @transform_1(%arg0: i32) -> (i32, i32) {
    %c0_i32 = arith.constant 0 : i32
    %c0_i32_0 = arith.constant 0 : i32
    %c0_i32_1 = arith.constant 0 : i32
    return %c0_i32, %c0_i32_0 : i32, i32
  }
  func.func @transform_2(%arg0: i32) -> (i32, i32) {
    %c0_i32 = arith.constant 0 : i32
    %c0_i32_0 = arith.constant 0 : i32
    %c0_i32_1 = arith.constant 0 : i32
    return %c0_i32, %c0_i32_0 : i32, i32
  }
  func.func @transform_3(%arg0: i32) -> (i32, i32, i32) {
    %c0_i32 = arith.constant 0 : i32
    %c0_i32_0 = arith.constant 0 : i32
    %c0_i32_1 = arith.constant 0 : i32
    %c0_i32_2 = arith.constant 0 : i32
    return %c0_i32, %c0_i32_0, %c0_i32_1 : i32, i32, i32
  }
  func.func @transform_4(%arg0: i32) -> (i32, i32, i32) {
    %c0_i32 = arith.constant 0 : i32
    %c0_i32_0 = arith.constant 0 : i32
    %c0_i32_1 = arith.constant 0 : i32
    %c0_i32_2 = arith.constant 0 : i32
    return %c0_i32, %c0_i32_0, %c0_i32_1 : i32, i32, i32
  }
  func.func @transform_5(%arg0: i32) -> (i32, i32) {
    %c0_i32 = arith.constant 0 : i32
    %c0_i32_0 = arith.constant 0 : i32
    %c0_i32_1 = arith.constant 0 : i32
    return %c0_i32, %c0_i32_0 : i32, i32
  }
  func.func @transform_6(%arg0: i32) -> (i32, i32) {
    %c0_i32 = arith.constant 0 : i32
    %c0_i32_0 = arith.constant 0 : i32
    %c0_i32_1 = arith.constant 0 : i32
    return %c0_i32, %c0_i32_0 : i32, i32
  }
  func.func @transform_7(%arg0: i32) -> (i32, i32) {
    %c0_i32 = arith.constant 0 : i32
    %c0_i32_0 = arith.constant 0 : i32
    %c0_i32_1 = arith.constant 0 : i32
    return %c0_i32, %c0_i32_0 : i32, i32
  }
  func.func @transform_8(%arg0: i32) -> (i32, i32) {
    %c0_i32 = arith.constant 0 : i32
    %c0_i32_0 = arith.constant 0 : i32
    %c0_i32_1 = arith.constant 0 : i32
    return %c0_i32, %c0_i32_0 : i32, i32
  }
  func.func @transform_9(%arg0: i32) -> (i32, i32) {
    %c0_i32 = arith.constant 0 : i32
    %c0_i32_0 = arith.constant 0 : i32
    %c0_i32_1 = arith.constant 0 : i32
    return %c0_i32, %c0_i32_0 : i32, i32
  }
  func.func @transform_10(%arg0: i32) -> (i32, i32) {
    %c0_i32 = arith.constant 0 : i32
    %c0_i32_0 = arith.constant 0 : i32
    %c0_i32_1 = arith.constant 0 : i32
    return %c0_i32, %c0_i32_0 : i32, i32
  }
}

</mosaic_0001>

<llo_original>
// kernel: encoder_block_forward.1
$region0: #{encoder_block_forward.1}
  #allocation0 [shape = 'u32[]', space=smem, size = 0x4, offset = 0x4, fixed_abs, tag = 'smem constant byte address 0x4 - core index']
  #allocation1 [shape = 'u32[144,128]{1,0:T(1,128)}', space=vmem, size = 0x12000, scoped, tag = 'internal scratch']
  #allocation2 [shape = 'f32[8,64]{1,0:T(8,128)}', space=vmem, size = 0x1000, scoped, tag = 'scratch operand']
  #allocation3 [shape = 'f32[6,96]{1,0:T(8,128)}', space=vmem, size = 0x1000, scoped, tag = 'scratch operand']
  %s0 = inlined_call_operand.vmem [shape: f32[8,256], index: 0, kind: input, shape index: {}]
  %s1 = inlined_call_operand.vmem [shape: f32[128,64], index: 1, kind: input, shape index: {}]
  %s2 = inlined_call_operand.vmem [shape: f32[128,64], index: 2, kind: input, shape index: {}]
  %s3 = inlined_call_operand.vmem [shape: f32[3,64,96], index: 3, kind: input, shape index: {}]
  %s4 = inlined_call_operand.vmem [shape: f32[3,96,64], index: 4, kind: input, shape index: {}]
  %s5 = inlined_call_operand.vmem [shape: f32[96,8], index: 5, kind: input, shape index: {}]
  %s6 = inlined_call_operand.vmem [shape: f32[8,96], index: 6, kind: input, shape index: {}]
  %s7 = inlined_call_operand.vmem [shape: f32[64,8], index: 7, kind: input, shape index: {}]
  %s8 = inlined_call_operand.vmem [shape: f32[8,64], index: 8, kind: input, shape index: {}]
  %s9 = inlined_call_operand.vmem [shape: f32[4,8], index: 9, kind: input, shape index: {}]
  %s10 = inlined_call_operand.vmem [shape: f32[4,64], index: 10, kind: output, shape index: {}]
  %s11 = sld [smem:[#allocation0]]
  $region50: #{encoder_block_forward.1} parent=0
    _
  %s13 = ssub.s32 1, %s11
  %s14 = scalar_select 0, %s13, %s11
  // Predicated region
  $region2: #{encoder_block_forward.1} parent=0 // pred_check
    _
  $region3: #{encoder_block_forward.1} parent=0 // pred_check_branch
    %16 = sbr.rel (0) target = $region5
  $region4: #{encoder_block_forward.1} parent=0 // pred_region
    _
  $region5: #{encoder_block_forward.1} parent=0 // pred_fallthru
    _
  // Predicated region
  $region6: #{encoder_block_forward.1} parent=0 // pred_check
    _
  $region7: #{encoder_block_forward.1} parent=0 // pred_check_branch
    %18 = sbr.rel (0) target = $region9
  $region8: #{encoder_block_forward.1} parent=0 // pred_region
    _
  $region9: #{encoder_block_forward.1} parent=0 // pred_fallthru
    _
  // Predicated region
  $region10: #{encoder_block_forward.1} parent=0 // pred_check
    _
  $region11: #{encoder_block_forward.1} parent=0 // pred_check_branch
    %20 = sbr.rel (0) target = $region13
  $region12: #{encoder_block_forward.1} parent=0 // pred_region
    _
  $region13: #{encoder_block_forward.1} parent=0 // pred_fallthru
    _
  // Predicated region
  $region14: #{encoder_block_forward.1} parent=0 // pred_check
    _
  $region15: #{encoder_block_forward.1} parent=0 // pred_check_branch
    %22 = sbr.rel (0) target = $region17
  $region16: #{encoder_block_forward.1} parent=0 // pred_region
    _
  $region17: #{encoder_block_forward.1} parent=0 // pred_fallthru
    _
  // Predicated region
  $region18: #{encoder_block_forward.1} parent=0 // pred_check
    _
  $region19: #{encoder_block_forward.1} parent=0 // pred_check_branch
    %24 = sbr.rel (0) target = $region21
  $region20: #{encoder_block_forward.1} parent=0 // pred_region
    _
  $region21: #{encoder_block_forward.1} parent=0 // pred_fallthru
    _
  // Predicated region
  $region22: #{encoder_block_forward.1} parent=0 // pred_check
    _
  $region23: #{encoder_block_forward.1} parent=0 // pred_check_branch
    %26 = sbr.rel (0) target = $region25
  $region24: #{encoder_block_forward.1} parent=0 // pred_region
    _
  $region25: #{encoder_block_forward.1} parent=0 // pred_fallthru
    _
  // Predicated region
  $region26: #{encoder_block_forward.1} parent=0 // pred_check
    _
  $region27: #{encoder_block_forward.1} parent=0 // pred_check_branch
    %28 = sbr.rel (0) target = $region29
  $region28: #{encoder_block_forward.1} parent=0 // pred_region
    _
  $region29: #{encoder_block_forward.1} parent=0 // pred_fallthru
    _
  // Predicated region
  $region30: #{encoder_block_forward.1} parent=0 // pred_check
    _
  $region31: #{encoder_block_forward.1} parent=0 // pred_check_branch
    %30 = sbr.rel (0) target = $region33
  $region32: #{encoder_block_forward.1} parent=0 // pred_region
    _
  $region33: #{encoder_block_forward.1} parent=0 // pred_fallthru
    _
  // Predicated region
  $region34: #{encoder_block_forward.1} parent=0 // pred_check
    _
  $region35: #{encoder_block_forward.1} parent=0 // pred_check_branch
    %32 = sbr.rel (0) target = $region37
  $region36: #{encoder_block_forward.1} parent=0 // pred_region
    _
  $region37: #{encoder_block_forward.1} parent=0 // pred_fallthru
    _
  // Predicated region
  $region38: #{encoder_block_forward.1} parent=0 // pred_check
    _
  $region39: #{encoder_block_forward.1} parent=0 // pred_check_branch
    %34 = sbr.rel (0) target = $region41
  $region40: #{encoder_block_forward.1} parent=0 // pred_region
    _
  $region41: #{encoder_block_forward.1} parent=0 // pred_fallthru
    _
  %v35 = vld [vmem:[%s0] sm:$0xff]
  %v36 = vld [vmem:[%s0 + $0x8] sm:$0xff]
  %v37 = vmax.f32 %v35, %v36
  %v38 = vld [vmem:[%s1] sm:$0xff]
  %v39 = vld [vmem:[%s1 + $0x8] sm:$0xff]
  %v40 = vld [vmem:[%s1 + $0x10] sm:$0xff]
  %v41 = vld [vmem:[%s1 + $0x18] sm:$0xff]
  %v42 = vld [vmem:[%s1 + $0x20] sm:$0xff]
  %v43 = vld [vmem:[%s1 + $0x28] sm:$0xff]
  %v44 = vld [vmem:[%s1 + $0x30] sm:$0xff]
  %v45 = vld [vmem:[%s1 + $0x38] sm:$0xff]
  %v46 = vld [vmem:[%s1 + $0x40] sm:$0xff]
  %v47 = vld [vmem:[%s1 + $0x48] sm:$0xff]
  %v48 = vld [vmem:[%s1 + $0x50] sm:$0xff]
  %v49 = vld [vmem:[%s1 + $0x58] sm:$0xff]
  %v50 = vld [vmem:[%s1 + $0x60] sm:$0xff]
  %v51 = vld [vmem:[%s1 + $0x68] sm:$0xff]
  %v52 = vld [vmem:[%s1 + $0x70] sm:$0xff]
  %v53 = vld [vmem:[%s1 + $0x78] sm:$0xff]
  %54 = vmatprep.subr.mxu0 0.0
  %55 = vmatpush1.msra.mxu0 %v38
  %56 = vmatprep.subr.mxu0 0.0
  %57 = vmatpush1.msra.mxu0 %v39
  %58 = vmatprep.subr.mxu0 0.0
  %59 = vmatpush1.msra.mxu0 %v40
  %60 = vmatprep.subr.mxu0 0.0
  %61 = vmatpush1.msra.mxu0 %v41
  %62 = vmatprep.subr.mxu0 0.0
  %63 = vmatpush1.msra.mxu0 %v42
  %64 = vmatprep.subr.mxu0 0.0
  %65 = vmatpush1.msra.mxu0 %v43
  %66 = vmatprep.subr.mxu0 0.0
  %67 = vmatpush1.msra.mxu0 %v44
  %68 = vmatprep.subr.mxu0 0.0
  %69 = vmatpush1.msra.mxu0 %v45
  %70 = vmatprep.subr.mxu0 0.0
  %71 = vmatpush1.msra.mxu0 %v46
  %72 = vmatprep.subr.mxu0 0.0
  %73 = vmatpush1.msra.mxu0 %v47
  %74 = vmatprep.subr.mxu0 0.0
  %75 = vmatpush1.msra.mxu0 %v48
  %76 = vmatprep.subr.mxu0 0.0
  %77 = vmatpush1.msra.mxu0 %v49
  %78 = vmatprep.subr.mxu0 0.0
  %79 = vmatpush1.msra.mxu0 %v50
  %80 = vmatprep.subr.mxu0 0.0
  %81 = vmatpush1.msra.mxu0 %v51
  %82 = vmatprep.subr.mxu0 0.0
  %83 = vmatpush1.msra.mxu0 %v52
  %84 = vmatprep.subr.mxu0 0.0
  %85 = vmatpush1.msra.mxu0 %v53
  %86 = vmatprep.subr.mxu0 0.0
  %87 = vmatpush1.msra.mxu0 0.0
  %88 = vmatprep.subr.mxu0 0.0
  %89 = vmatpush1.msra.mxu0 0.0
  %90 = vmatprep.subr.mxu0 0.0
  %91 = vmatpush1.msra.mxu0 0.0
  %92 = vmatprep.subr.mxu0 0.0
  %93 = vmatpush1.msra.mxu0 0.0
  %94 = vmatprep.subr.mxu0 0.0
  %95 = vmatpush1.msra.mxu0 0.0
  %96 = vmatprep.subr.mxu0 0.0
  %97 = vmatpush1.msra.mxu0 0.0
  %98 = vmatprep.subr.mxu0 0.0
  %99 = vmatpush1.msra.mxu0 0.0
  %100 = vmatprep.subr.mxu0 0.0
  %101 = vmatpush1.msra.mxu0 0.0
  %102 = vmatprep.subr.mxu0 0.0
  %103 = vmatpush1.msra.mxu0 0.0
  %104 = vmatprep.subr.mxu0 0.0
  %105 = vmatpush1.msra.mxu0 0.0
  %106 = vmatprep.subr.mxu0 0.0
  %107 = vmatpush1.msra.mxu0 0.0
  %108 = vmatprep.subr.mxu0 0.0
  %109 = vmatpush1.msra.mxu0 0.0
  %110 = vmatprep.subr.mxu0 0.0
  %111 = vmatpush1.msra.mxu0 0.0
  %112 = vmatprep.subr.mxu0 0.0
  %113 = vmatpush1.msra.mxu0 0.0
  %114 = vmatprep.subr.mxu0 0.0
  %115 = vmatpush1.msra.mxu0 0.0
  %116 = vmatprep.subr.mxu0 0.0
  %117 = vmatpush1.msra.mxu0 0.0
  %118 = vmatprep.mubr.f32.mxu0 0.0
  %119 = vmatmul.mubr.f32.gmra.mrb[0].mxu0 %v37
  %v120 = vpop.f32.mrb[0].mxu0
  %v121 = vadd.f32 0.0, %v120
  %v122 = vpop.f32.mrb[0].mxu0
  %123 = vdwg.mxu0
  %v124 = vld [vmem:[%s2] sm:$0xff]
  %v125 = vld [vmem:[%s2 + $0x8] sm:$0xff]
  %v126 = vld [vmem:[%s2 + $0x10] sm:$0xff]
  %v127 = vld [vmem:[%s2 + $0x18] sm:$0xff]
  %v128 = vld [vmem:[%s2 + $0x20] sm:$0xff]
  %v129 = vld [vmem:[%s2 + $0x28] sm:$0xff]
  %v130 = vld [vmem:[%s2 + $0x30] sm:$0xff]
  %v131 = vld [vmem:[%s2 + $0x38] sm:$0xff]
  %v132 = vld [vmem:[%s2 + $0x40] sm:$0xff]
  %v133 = vld [vmem:[%s2 + $0x48] sm:$0xff]
  %v134 = vld [vmem:[%s2 + $0x50] sm:$0xff]
  %v135 = vld [vmem:[%s2 + $0x58] sm:$0xff]
  %v136 = vld [vmem:[%s2 + $0x60] sm:$0xff]
  %v137 = vld [vmem:[%s2 + $0x68] sm:$0xff]
  %v138 = vld [vmem:[%s2 + $0x70] sm:$0xff]
  %v139 = vld [vmem:[%s2 + $0x78] sm:$0xff]
  %140 = vmatprep.subr.mxu0 0.0
  %141 = vmatpush1.msra.mxu0 %v124
  %142 = vmatprep.subr.mxu0 0.0
  %143 = vmatpush1.msra.mxu0 %v125
  %144 = vmatprep.subr.mxu0 0.0
  %145 = vmatpush1.msra.mxu0 %v126
  %146 = vmatprep.subr.mxu0 0.0
  %147 = vmatpush1.msra.mxu0 %v127
  %148 = vmatprep.subr.mxu0 0.0
  %149 = vmatpush1.msra.mxu0 %v128
  %150 = vmatprep.subr.mxu0 0.0
  %151 = vmatpush1.msra.mxu0 %v129
  %152 = vmatprep.subr.mxu0 0.0
  %153 = vmatpush1.msra.mxu0 %v130
  %154 = vmatprep.subr.mxu0 0.0
  %155 = vmatpush1.msra.mxu0 %v131
  %156 = vmatprep.subr.mxu0 0.0
  %157 = vmatpush1.msra.mxu0 %v132
  %158 = vmatprep.subr.mxu0 0.0
  %159 = vmatpush1.msra.mxu0 %v133
  %160 = vmatprep.subr.mxu0 0.0
  %161 = vmatpush1.msra.mxu0 %v134
  %162 = vmatprep.subr.mxu0 0.0
  %163 = vmatpush1.msra.mxu0 %v135
  %164 = vmatprep.subr.mxu0 0.0
  %165 = vmatpush1.msra.mxu0 %v136
  %166 = vmatprep.subr.mxu0 0.0
  %167 = vmatpush1.msra.mxu0 %v137
  %168 = vmatprep.subr.mxu0 0.0
  %169 = vmatpush1.msra.mxu0 %v138
  %170 = vmatprep.subr.mxu0 0.0
  %171 = vmatpush1.msra.mxu0 %v139
  %172 = vmatprep.subr.mxu0 0.0
  %173 = vmatpush1.msra.mxu0 0.0
  %174 = vmatprep.subr.mxu0 0.0
  %175 = vmatpush1.msra.mxu0 0.0
  %176 = vmatprep.subr.mxu0 0.0
  %177 = vmatpush1.msra.mxu0 0.0
  %178 = vmatprep.subr.mxu0 0.0
  %179 = vmatpush1.msra.mxu0 0.0
  %180 = vmatprep.subr.mxu0 0.0
  %181 = vmatpush1.msra.mxu0 0.0
  %182 = vmatprep.subr.mxu0 0.0
  %183 = vmatpush1.msra.mxu0 0.0
  %184 = vmatprep.subr.mxu0 0.0
  %185 = vmatpush1.msra.mxu0 0.0
  %186 = vmatprep.subr.mxu0 0.0
  %187 = vmatpush1.msra.mxu0 0.0
  %188 = vmatprep.subr.mxu0 0.0
  %189 = vmatpush1.msra.mxu0 0.0
  %190 = vmatprep.subr.mxu0 0.0
  %191 = vmatpush1.msra.mxu0 0.0
  %192 = vmatprep.subr.mxu0 0.0
  %193 = vmatpush1.msra.mxu0 0.0
  %194 = vmatprep.subr.mxu0 0.0
  %195 = vmatpush1.msra.mxu0 0.0
  %196 = vmatprep.subr.mxu0 0.0
  %197 = vmatpush1.msra.mxu0 0.0
  %198 = vmatprep.subr.mxu0 0.0
  %199 = vmatpush1.msra.mxu0 0.0
  %200 = vmatprep.subr.mxu0 0.0
  %201 = vmatpush1.msra.mxu0 0.0
  %202 = vmatprep.subr.mxu0 0.0
  %203 = vmatpush1.msra.mxu0 0.0
  %204 = vmatprep.mubr.f32.mxu0 0.0
  %205 = vmatmul.mubr.f32.gmra.mrb[0].mxu0 %v37
  %v206 = vpop.f32.mrb[0].mxu0
  %v207 = vadd.f32 0.0, %v206
  %v208 = vpop.f32.mrb[0].mxu0
  %209 = vdwg.mxu0
  %v210 = vmax.f32 %v121, %v207
  %vm211 = vcmask 523264
  %212 = vst.msk [vmem:[#allocation2] sm:$0xff] %vm211, %v210
  %v213 = vld [vmem:[#allocation2] sm:$0x3f]
  %v214 = vld [vmem:[%s3] sm:$0xff]
  %v215 = vld [vmem:[%s3 + $0x8] sm:$0xff]
  %v216 = vld [vmem:[%s3 + $0x10] sm:$0xff]
  %v217 = vld [vmem:[%s3 + $0x18] sm:$0xff]
  %v218 = vld [vmem:[%s3 + $0x20] sm:$0xff]
  %v219 = vld [vmem:[%s3 + $0x28] sm:$0xff]
  %v220 = vld [vmem:[%s3 + $0x30] sm:$0xff]
  %v221 = vld [vmem:[%s3 + $0x38] sm:$0xff]
  %v222 = vld [vmem:[#allocation2 + $0x1] sm:$0x3f]
  %s223 = scalar_lea.vmem %s3, 64
  %v224 = vld [vmem:[%s223] sm:$0xff]
  %v225 = vld [vmem:[%s223 + $0x8] sm:$0xff]
  %v226 = vld [vmem:[%s223 + $0x10] sm:$0xff]
  %v227 = vld [vmem:[%s223 + $0x18] sm:$0xff]
  %v228 = vld [vmem:[%s223 + $0x20] sm:$0xff]
  %v229 = vld [vmem:[%s223 + $0x28] sm:$0xff]
  %v230 = vld [vmem:[%s223 + $0x30] sm:$0xff]
  %v231 = vld [vmem:[%s223 + $0x38] sm:$0xff]
  %v233 = vsel %vm211, %v222, 0
  %235 = vmatprep.subr.mxu0 0.0
  %236 = vmatpush1.msra.mxu0 %v224
  %237 = vmatprep.subr.mxu0 0.0
  %238 = vmatpush1.msra.mxu0 %v225
  %239 = vmatprep.subr.mxu0 0.0
  %240 = vmatpush1.msra.mxu0 %v226
  %241 = vmatprep.subr.mxu0 0.0
  %242 = vmatpush1.msra.mxu0 %v227
  %243 = vmatprep.subr.mxu0 0.0
  %244 = vmatpush1.msra.mxu0 %v228
  %245 = vmatprep.subr.mxu0 0.0
  %246 = vmatpush1.msra.mxu0 %v229
  %247 = vmatprep.subr.mxu0 0.0
  %248 = vmatpush1.msra.mxu0 %v230
  %249 = vmatprep.subr.mxu0 0.0
  %250 = vmatpush1.msra.mxu0 %v231
  %251 = vmatprep.subr.mxu0 0.0
  %252 = vmatpush1.msra.mxu0 0.0
  %253 = vmatprep.subr.mxu0 0.0
  %254 = vmatpush1.msra.mxu0 0.0
  %255 = vmatprep.subr.mxu0 0.0
  %256 = vmatpush1.msra.mxu0 0.0
  %257 = vmatprep.subr.mxu0 0.0
  %258 = vmatpush1.msra.mxu0 0.0
  %259 = vmatprep.subr.mxu0 0.0
  %260 = vmatpush1.msra.mxu0 0.0
  %261 = vmatprep.subr.mxu0 0.0
  %262 = vmatpush1.msra.mxu0 0.0
  %263 = vmatprep.subr.mxu0 0.0
  %264 = vmatpush1.msra.mxu0 0.0
  %265 = vmatprep.subr.mxu0 0.0
  %266 = vmatpush1.msra.mxu0 0.0
  %267 = vmatprep.subr.mxu0 0.0
  %268 = vmatpush1.msra.mxu0 0.0
  %269 = vmatprep.subr.mxu0 0.0
  %270 = vmatpush1.msra.mxu0 0.0
  %271 = vmatprep.subr.mxu0 0.0
  %272 = vmatpush1.msra.mxu0 0.0
  %273 = vmatprep.subr.mxu0 0.0
  %274 = vmatpush1.msra.mxu0 0.0
  %275 = vmatprep.subr.mxu0 0.0
  %276 = vmatpush1.msra.mxu0 0.0
  %277 = vmatprep.subr.mxu0 0.0
  %278 = vmatpush1.msra.mxu0 0.0
  %279 = vmatprep.subr.mxu0 0.0
  %280 = vmatpush1.msra.mxu0 0.0
  %281 = vmatprep.subr.mxu0 0.0
  %282 = vmatpush1.msra.mxu0 0.0
  %283 = vmatprep.subr.mxu0 0.0
  %284 = vmatpush1.msra.mxu0 0.0
  %285 = vmatprep.subr.mxu0 0.0
  %286 = vmatpush1.msra.mxu0 0.0
  %287 = vmatprep.subr.mxu0 0.0
  %288 = vmatpush1.msra.mxu0 0.0
  %289 = vmatprep.subr.mxu0 0.0
  %290 = vmatpush1.msra.mxu0 0.0
  %291 = vmatprep.subr.mxu0 0.0
  %292 = vmatpush1.msra.mxu0 0.0
  %293 = vmatprep.subr.mxu0 0.0
  %294 = vmatpush1.msra.mxu0 0.0
  %295 = vmatprep.subr.mxu0 0.0
  %296 = vmatpush1.msra.mxu0 0.0
  %297 = vmatprep.subr.mxu0 0.0
  %298 = vmatpush1.msra.mxu0 0.0
  %299 = vmatprep.mubr.f32.mxu0 0.0
  %300 = vmatmul.mubr.f32.gmra.mrb[0].mxu0 %v233
  %v301 = vpop.f32.mrb[0].mxu0
  %v302 = vadd.f32 0.0, %v301
  %v303 = vpop.f32.mrb[0].mxu0
  %304 = vdwg.mxu0
  %v306 = vsel %vm211, %v213, 0
  %308 = vmatprep.subr.mxu0 0.0
  %309 = vmatpush1.msra.mxu0 %v214
  %310 = vmatprep.subr.mxu0 0.0
  %311 = vmatpush1.msra.mxu0 %v215
  %312 = vmatprep.subr.mxu0 0.0
  %313 = vmatpush1.msra.mxu0 %v216
  %314 = vmatprep.subr.mxu0 0.0
  %315 = vmatpush1.msra.mxu0 %v217
  %316 = vmatprep.subr.mxu0 0.0
  %317 = vmatpush1.msra.mxu0 %v218
  %318 = vmatprep.subr.mxu0 0.0
  %319 = vmatpush1.msra.mxu0 %v219
  %320 = vmatprep.subr.mxu0 0.0
  %321 = vmatpush1.msra.mxu0 %v220
  %322 = vmatprep.subr.mxu0 0.0
  %323 = vmatpush1.msra.mxu0 %v221
  %324 = vmatprep.subr.mxu0 0.0
  %325 = vmatpush1.msra.mxu0 0.0
  %326 = vmatprep.subr.mxu0 0.0
  %327 = vmatpush1.msra.mxu0 0.0
  %328 = vmatprep.subr.mxu0 0.0
  %329 = vmatpush1.msra.mxu0 0.0
  %330 = vmatprep.subr.mxu0 0.0
  %331 = vmatpush1.msra.mxu0 0.0
  %332 = vmatprep.subr.mxu0 0.0
  %333 = vmatpush1.msra.mxu0 0.0
  %334 = vmatprep.subr.mxu0 0.0
  %335 = vmatpush1.msra.mxu0 0.0
  %336 = vmatprep.subr.mxu0 0.0
  %337 = vmatpush1.msra.mxu0 0.0
  %338 = vmatprep.subr.mxu0 0.0
  %339 = vmatpush1.msra.mxu0 0.0
  %340 = vmatprep.subr.mxu0 0.0
  %341 = vmatpush1.msra.mxu0 0.0
  %342 = vmatprep.subr.mxu0 0.0
  %343 = vmatpush1.msra.mxu0 0.0
  %344 = vmatprep.subr.mxu0 0.0
  %345 = vmatpush1.msra.mxu0 0.0
  %346 = vmatprep.subr.mxu0 0.0
  %347 = vmatpush1.msra.mxu0 0.0
  %348 = vmatprep.subr.mxu0 0.0
  %349 = vmatpush1.msra.mxu0 0.0
  %350 = vmatprep.subr.mxu0 0.0
  %351 = vmatpush1.msra.mxu0 0.0
  %352 = vmatprep.subr.mxu0 0.0
  %353 = vmatpush1.msra.mxu0 0.0
  %354 = vmatprep.subr.mxu0 0.0
  %355 = vmatpush1.msra.mxu0 0.0
  %356 = vmatprep.subr.mxu0 0.0
  %357 = vmatpush1.msra.mxu0 0.0
  %358 = vmatprep.subr.mxu0 0.0
  %359 = vmatpush1.msra.mxu0 0.0
  %360 = vmatprep.subr.mxu0 0.0
  %361 = vmatpush1.msra.mxu0 0.0
  %362 = vmatprep.subr.mxu0 0.0
  %363 = vmatpush1.msra.mxu0 0.0
  %364 = vmatprep.subr.mxu0 0.0
  %365 = vmatpush1.msra.mxu0 0.0
  %366 = vmatprep.subr.mxu0 0.0
  %367 = vmatpush1.msra.mxu0 0.0
  %368 = vmatprep.subr.mxu0 0.0
  %369 = vmatpush1.msra.mxu0 0.0
  %370 = vmatprep.subr.mxu0 0.0
  %371 = vmatpush1.msra.mxu0 0.0
  %372 = vmatprep.mubr.f32.mxu0 0.0
  %373 = vmatmul.mubr.f32.gmra.mrb[0].mxu0 %v306
  %v374 = vpop.f32.mrb[0].mxu0
  %v375 = vadd.f32 %v302, %v374
  %v376 = vpop.f32.mrb[0].mxu0
  %377 = vdwg.mxu0
  %v378 = vld [vmem:[#allocation2 + $0x2] sm:$0x3f]
  %s379 = scalar_lea.vmem %s3, 128
  %v380 = vld [vmem:[%s379] sm:$0xff]
  %v381 = vld [vmem:[%s379 + $0x8] sm:$0xff]
  %v382 = vld [vmem:[%s379 + $0x10] sm:$0xff]
  %v383 = vld [vmem:[%s379 + $0x18] sm:$0xff]
  %v384 = vld [vmem:[%s379 + $0x20] sm:$0xff]
  %v385 = vld [vmem:[%s379 + $0x28] sm:$0xff]
  %v386 = vld [vmem:[%s379 + $0x30] sm:$0xff]
  %v387 = vld [vmem:[%s379 + $0x38] sm:$0xff]
  %v389 = vsel %vm211, %v378, 0
  %391 = vmatprep.subr.mxu0 0.0
  %392 = vmatpush1.msra.mxu0 %v380
  %393 = vmatprep.subr.mxu0 0.0
  %394 = vmatpush1.msra.mxu0 %v381
  %395 = vmatprep.subr.mxu0 0.0
  %396 = vmatpush1.msra.mxu0 %v382
  %397 = vmatprep.subr.mxu0 0.0
  %398 = vmatpush1.msra.mxu0 %v383
  %399 = vmatprep.subr.mxu0 0.0
  %400 = vmatpush1.msra.mxu0 %v384
  %401 = vmatprep.subr.mxu0 0.0
  %402 = vmatpush1.msra.mxu0 %v385
  %403 = vmatprep.subr.mxu0 0.0
  %404 = vmatpush1.msra.mxu0 %v386
  %405 = vmatprep.subr.mxu0 0.0
  %406 = vmatpush1.msra.mxu0 %v387
  %407 = vmatprep.subr.mxu0 0.0
  %408 = vmatpush1.msra.mxu0 0.0
  %409 = vmatprep.subr.mxu0 0.0
  %410 = vmatpush1.msra.mxu0 0.0
  %411 = vmatprep.subr.mxu0 0.0
  %412 = vmatpush1.msra.mxu0 0.0
  %413 = vmatprep.subr.mxu0 0.0
  %414 = vmatpush1.msra.mxu0 0.0
  %415 = vmatprep.subr.mxu0 0.0
  %416 = vmatpush1.msra.mxu0 0.0
  %417 = vmatprep.subr.mxu0 0.0
  %418 = vmatpush1.msra.mxu0 0.0
  %419 = vmatprep.subr.mxu0 0.0
  %420 = vmatpush1.msra.mxu0 0.0
  %421 = vmatprep.subr.mxu0 0.0
  %422 = vmatpush1.msra.mxu0 0.0
  %423 = vmatprep.subr.mxu0 0.0
  %424 = vmatpush1.msra.mxu0 0.0
  %425 = vmatprep.subr.mxu0 0.0
  %426 = vmatpush1.msra.mxu0 0.0
  %427 = vmatprep.subr.mxu0 0.0
  %428 = vmatpush1.msra.mxu0 0.0
  %429 = vmatprep.subr.mxu0 0.0
  %430 = vmatpush1.msra.mxu0 0.0
  %431 = vmatprep.subr.mxu0 0.0
  %432 = vmatpush1.msra.mxu0 0.0
  %433 = vmatprep.subr.mxu0 0.0
  %434 = vmatpush1.msra.mxu0 0.0
  %435 = vmatprep.subr.mxu0 0.0
  %436 = vmatpush1.msra.mxu0 0.0
  %437 = vmatprep.subr.mxu0 0.0
  %438 = vmatpush1.msra.mxu0 0.0
  %439 = vmatprep.subr.mxu0 0.0
  %440 = vmatpush1.msra.mxu0 0.0
  %441 = vmatprep.subr.mxu0 0.0
  %442 = vmatpush1.msra.mxu0 0.0
  %443 = vmatprep.subr.mxu0 0.0
  %444 = vmatpush1.msra.mxu0 0.0
  %445 = vmatprep.subr.mxu0 0.0
  %446 = vmatpush1.msra.mxu0 0.0
  %447 = vmatprep.subr.mxu0 0.0
  %448 = vmatpush1.msra.mxu0 0.0
  %449 = vmatprep.subr.mxu0 0.0
  %450 = vmatpush1.msra.mxu0 0.0
  %451 = vmatprep.subr.mxu0 0.0
  %452 = vmatpush1.msra.mxu0 0.0
  %453 = vmatprep.subr.mxu0 0.0
  %454 = vmatpush1.msra.mxu0 0.0
  %455 = vmatprep.mubr.f32.mxu0 0.0
  %456 = vmatmul.mubr.f32.gmra.mrb[0].mxu0 %v389
  %v457 = vpop.f32.mrb[0].mxu0
  %v458 = vadd.f32 0.0, %v457
  %v459 = vpop.f32.mrb[0].mxu0
  %460 = vdwg.mxu0
  %v461 = vadd.f32 %v375, %v458
  %vm462 = vcmask 783360
  %v463 = vsel %vm462, %v461, 0.0
  %v464 = vrot.slane %v463, 4
  %v465 = vadd.f32 %v463, %v464
  %v466 = vrot.slane %v465, 2
  %v467 = vadd.f32 %v465, %v466
  %v468 = vrot.slane %v467, 1
  %v469 = vadd.f32 %v467, %v468
  %v470 = vld [vmem:[%s5] sm:$0xff]
  %v471 = vld [vmem:[%s5 + $0x8] sm:$0xff]
  %v472 = vld [vmem:[%s5 + $0x10] sm:$0xff]
  %v473 = vld [vmem:[%s5 + $0x18] sm:$0xff]
  %v474 = vld [vmem:[%s5 + $0x20] sm:$0xff]
  %v475 = vld [vmem:[%s5 + $0x28] sm:$0xff]
  %v476 = vld [vmem:[%s5 + $0x30] sm:$0xff]
  %v477 = vld [vmem:[%s5 + $0x38] sm:$0xff]
  %v478 = vld [vmem:[%s5 + $0x40] sm:$0xff]
  %v479 = vld [vmem:[%s5 + $0x48] sm:$0xff]
  %v480 = vld [vmem:[%s5 + $0x50] sm:$0xff]
  %v481 = vld [vmem:[%s5 + $0x58] sm:$0xff]
  %vm482 = vcmask 785408
  %v484 = vsel %vm482, %v469, 0
  %486 = vmatprep.subr.mxu0 0.0
  %487 = vmatpush1.msra.mxu0 %v470
  %488 = vmatprep.subr.mxu0 0.0
  %489 = vmatpush1.msra.mxu0 %v471
  %490 = vmatprep.subr.mxu0 0.0
  %491 = vmatpush1.msra.mxu0 %v472
  %492 = vmatprep.subr.mxu0 0.0
  %493 = vmatpush1.msra.mxu0 %v473
  %494 = vmatprep.subr.mxu0 0.0
  %495 = vmatpush1.msra.mxu0 %v474
  %496 = vmatprep.subr.mxu0 0.0
  %497 = vmatpush1.msra.mxu0 %v475
  %498 = vmatprep.subr.mxu0 0.0
  %499 = vmatpush1.msra.mxu0 %v476
  %500 = vmatprep.subr.mxu0 0.0
  %501 = vmatpush1.msra.mxu0 %v477
  %502 = vmatprep.subr.mxu0 0.0
  %503 = vmatpush1.msra.mxu0 %v478
  %504 = vmatprep.subr.mxu0 0.0
  %505 = vmatpush1.msra.mxu0 %v479
  %506 = vmatprep.subr.mxu0 0.0
  %507 = vmatpush1.msra.mxu0 %v480
  %508 = vmatprep.subr.mxu0 0.0
  %509 = vmatpush1.msra.mxu0 %v481
  %510 = vmatprep.subr.mxu0 0.0
  %511 = vmatpush1.msra.mxu0 0.0
  %512 = vmatprep.subr.mxu0 0.0
  %513 = vmatpush1.msra.mxu0 0.0
  %514 = vmatprep.subr.mxu0 0.0
  %515 = vmatpush1.msra.mxu0 0.0
  %516 = vmatprep.subr.mxu0 0.0
  %517 = vmatpush1.msra.mxu0 0.0
  %518 = vmatprep.subr.mxu0 0.0
  %519 = vmatpush1.msra.mxu0 0.0
  %520 = vmatprep.subr.mxu0 0.0
  %521 = vmatpush1.msra.mxu0 0.0
  %522 = vmatprep.subr.mxu0 0.0
  %523 = vmatpush1.msra.mxu0 0.0
  %524 = vmatprep.subr.mxu0 0.0
  %525 = vmatpush1.msra.mxu0 0.0
  %526 = vmatprep.subr.mxu0 0.0
  %527 = vmatpush1.msra.mxu0 0.0
  %528 = vmatprep.subr.mxu0 0.0
  %529 = vmatpush1.msra.mxu0 0.0
  %530 = vmatprep.subr.mxu0 0.0
  %531 = vmatpush1.msra.mxu0 0.0
  %532 = vmatprep.subr.mxu0 0.0
  %533 = vmatpush1.msra.mxu0 0.0
  %534 = vmatprep.subr.mxu0 0.0
  %535 = vmatpush1.msra.mxu0 0.0
  %536 = vmatprep.subr.mxu0 0.0
  %537 = vmatpush1.msra.mxu0 0.0
  %538 = vmatprep.subr.mxu0 0.0
  %539 = vmatpush1.msra.mxu0 0.0
  %540 = vmatprep.subr.mxu0 0.0
  %541 = vmatpush1.msra.mxu0 0.0
  %542 = vmatprep.subr.mxu0 0.0
  %543 = vmatpush1.msra.mxu0 0.0
  %544 = vmatprep.subr.mxu0 0.0
  %545 = vmatpush1.msra.mxu0 0.0
  %546 = vmatprep.subr.mxu0 0.0
  %547 = vmatpush1.msra.mxu0 0.0
  %548 = vmatprep.subr.mxu0 0.0
  %549 = vmatpush1.msra.mxu0 0.0
  %550 = vmatprep.mubr.f32.mxu0 0.0
  %551 = vmatmul.mubr.f32.gmra.mrb[0].mxu0 %v484
  %v552 = vpop.f32.mrb[0].mxu0
  %v553 = vadd.f32 0.0, %v552
  %v554 = vpop.f32.mrb[0].mxu0
  %555 = vdwg.mxu0
  %v556 = vrcp.pop 72.0
  %v557 = vmul.f32 %v553, %v556
  %v558 = vld [vmem:[%s6] sm:$0xff]
  %vm559 = vcmask 64512
  %v561 = vsel %vm559, %v557, 0
  %563 = vmatprep.subr.mxu0 0.0
  %564 = vmatpush1.msra.mxu0 %v558
  %565 = vmatprep.subr.mxu0 0.0
  %566 = vmatpush1.msra.mxu0 0.0
  %567 = vmatprep.subr.mxu0 0.0
  %568 = vmatpush1.msra.mxu0 0.0
  %569 = vmatprep.subr.mxu0 0.0
  %570 = vmatpush1.msra.mxu0 0.0
  %571 = vmatprep.subr.mxu0 0.0
  %572 = vmatpush1.msra.mxu0 0.0
  %573 = vmatprep.subr.mxu0 0.0
  %574 = vmatpush1.msra.mxu0 0.0
  %575 = vmatprep.subr.mxu0 0.0
  %576 = vmatpush1.msra.mxu0 0.0
  %577 = vmatprep.subr.mxu0 0.0
  %578 = vmatpush1.msra.mxu0 0.0
  %579 = vmatprep.subr.mxu0 0.0
  %580 = vmatpush1.msra.mxu0 0.0
  %581 = vmatprep.subr.mxu0 0.0
  %582 = vmatpush1.msra.mxu0 0.0
  %583 = vmatprep.subr.mxu0 0.0
  %584 = vmatpush1.msra.mxu0 0.0
  %585 = vmatprep.subr.mxu0 0.0
  %586 = vmatpush1.msra.mxu0 0.0
  %587 = vmatprep.subr.mxu0 0.0
  %588 = vmatpush1.msra.mxu0 0.0
  %589 = vmatprep.subr.mxu0 0.0
  %590 = vmatpush1.msra.mxu0 0.0
  %591 = vmatprep.subr.mxu0 0.0
  %592 = vmatpush1.msra.mxu0 0.0
  %593 = vmatprep.subr.mxu0 0.0
  %594 = vmatpush1.msra.mxu0 0.0
  %595 = vmatprep.subr.mxu0 0.0
  %596 = vmatpush1.msra.mxu0 0.0
  %597 = vmatprep.subr.mxu0 0.0
  %598 = vmatpush1.msra.mxu0 0.0
  %599 = vmatprep.subr.mxu0 0.0
  %600 = vmatpush1.msra.mxu0 0.0
  %601 = vmatprep.subr.mxu0 0.0
  %602 = vmatpush1.msra.mxu0 0.0
  %603 = vmatprep.subr.mxu0 0.0
  %604 = vmatpush1.msra.mxu0 0.0
  %605 = vmatprep.subr.mxu0 0.0
  %606 = vmatpush1.msra.mxu0 0.0
  %607 = vmatprep.subr.mxu0 0.0
  %608 = vmatpush1.msra.mxu0 0.0
  %609 = vmatprep.subr.mxu0 0.0
  %610 = vmatpush1.msra.mxu0 0.0
  %611 = vmatprep.subr.mxu0 0.0
  %612 = vmatpush1.msra.mxu0 0.0
  %613 = vmatprep.subr.mxu0 0.0
  %614 = vmatpush1.msra.mxu0 0.0
  %615 = vmatprep.subr.mxu0 0.0
  %616 = vmatpush1.msra.mxu0 0.0
  %617 = vmatprep.subr.mxu0 0.0
  %618 = vmatpush1.msra.mxu0 0.0
  %619 = vmatprep.subr.mxu0 0.0
  %620 = vmatpush1.msra.mxu0 0.0
  %621 = vmatprep.subr.mxu0 0.0
  %622 = vmatpush1.msra.mxu0 0.0
  %623 = vmatprep.subr.mxu0 0.0
  %624 = vmatpush1.msra.mxu0 0.0
  %625 = vmatprep.subr.mxu0 0.0
  %626 = vmatpush1.msra.mxu0 0.0
  %627 = vmatprep.mubr.f32.mxu0 0.0
  %628 = vmatmul.mubr.f32.gmra.mrb[0].mxu0 %v561
  %v629 = vpop.f32.mrb[0].mxu0
  %v630 = vadd.f32 0.0, %v629
  %v631 = vpop.f32.mrb[0].mxu0
  %632 = vdwg.mxu0
  %v633 = vlaneseq
  %v634 = vshrl.u32 %v633, 7
  %v635 = vsub.s32 0, %v634
  %v636 = vrot.slane %v630, %v635
  %v637 = vsub.f32 %v461, %v636
  %v638 = vmul.f32 %v637, %v637
  %v639 = vsel %vm462, %v638, 0.0
  %v640 = vrot.slane %v639, 4
  %v641 = vadd.f32 %v639, %v640
  %v642 = vrot.slane %v641, 2
  %v643 = vadd.f32 %v641, %v642
  %v644 = vrot.slane %v643, 1
  %v645 = vadd.f32 %v643, %v644
  %v647 = vsel %vm482, %v645, 0
  %649 = vmatprep.subr.mxu0 0.0
  %650 = vmatpush1.msra.mxu0 %v470
  %651 = vmatprep.subr.mxu0 0.0
  %652 = vmatpush1.msra.mxu0 %v471
  %653 = vmatprep.subr.mxu0 0.0
  %654 = vmatpush1.msra.mxu0 %v472
  %655 = vmatprep.subr.mxu0 0.0
  %656 = vmatpush1.msra.mxu0 %v473
  %657 = vmatprep.subr.mxu0 0.0
  %658 = vmatpush1.msra.mxu0 %v474
  %659 = vmatprep.subr.mxu0 0.0
  %660 = vmatpush1.msra.mxu0 %v475
  %661 = vmatprep.subr.mxu0 0.0
  %662 = vmatpush1.msra.mxu0 %v476
  %663 = vmatprep.subr.mxu0 0.0
  %664 = vmatpush1.msra.mxu0 %v477
  %665 = vmatprep.subr.mxu0 0.0
  %666 = vmatpush1.msra.mxu0 %v478
  %667 = vmatprep.subr.mxu0 0.0
  %668 = vmatpush1.msra.mxu0 %v479
  %669 = vmatprep.subr.mxu0 0.0
  %670 = vmatpush1.msra.mxu0 %v480
  %671 = vmatprep.subr.mxu0 0.0
  %672 = vmatpush1.msra.mxu0 %v481
  %673 = vmatprep.subr.mxu0 0.0
  %674 = vmatpush1.msra.mxu0 0.0
  %675 = vmatprep.subr.mxu0 0.0
  %676 = vmatpush1.msra.mxu0 0.0
  %677 = vmatprep.subr.mxu0 0.0
  %678 = vmatpush1.msra.mxu0 0.0
  %679 = vmatprep.subr.mxu0 0.0
  %680 = vmatpush1.msra.mxu0 0.0
  %681 = vmatprep.subr.mxu0 0.0
  %682 = vmatpush1.msra.mxu0 0.0
  %683 = vmatprep.subr.mxu0 0.0
  %684 = vmatpush1.msra.mxu0 0.0
  %685 = vmatprep.subr.mxu0 0.0
  %686 = vmatpush1.msra.mxu0 0.0
  %687 = vmatprep.subr.mxu0 0.0
  %688 = vmatpush1.msra.mxu0 0.0
  %689 = vmatprep.subr.mxu0 0.0
  %690 = vmatpush1.msra.mxu0 0.0
  %691 = vmatprep.subr.mxu0 0.0
  %692 = vmatpush1.msra.mxu0 0.0
  %693 = vmatprep.subr.mxu0 0.0
  %694 = vmatpush1.msra.mxu0 0.0
  %695 = vmatprep.subr.mxu0 0.0
  %696 = vmatpush1.msra.mxu0 0.0
  %697 = vmatprep.subr.mxu0 0.0
  %698 = vmatpush1.msra.mxu0 0.0
  %699 = vmatprep.subr.mxu0 0.0
  %700 = vmatpush1.msra.mxu0 0.0
  %701 = vmatprep.subr.mxu0 0.0
  %702 = vmatpush1.msra.mxu0 0.0
  %703 = vmatprep.subr.mxu0 0.0
  %704 = vmatpush1.msra.mxu0 0.0
  %705 = vmatprep.subr.mxu0 0.0
  %706 = vmatpush1.msra.mxu0 0.0
  %707 = vmatprep.subr.mxu0 0.0
  %708 = vmatpush1.msra.mxu0 0.0
  %709 = vmatprep.subr.mxu0 0.0
  %710 = vmatpush1.msra.mxu0 0.0
  %711 = vmatprep.subr.mxu0 0.0
  %712 = vmatpush1.msra.mxu0 0.0
  %713 = vmatprep.mubr.f32.mxu0 0.0
  %714 = vmatmul.mubr.f32.gmra.mrb[0].mxu0 %v647
  %v715 = vpop.f32.mrb[0].mxu0
  %v716 = vadd.f32 0.0, %v715
  %v717 = vpop.f32.mrb[0].mxu0
  %718 = vdwg.mxu0
  %v719 = vmul.f32 %v716, %v556
  %v720 = vld [vmem:[%s9] sm:$0x1]
  %v721 = vadd.f32 %v719, 1e-05
  %v722 = vrsqrt.pop %v721
  %v723 = vmul.f32 %v720, %v722
  %v724 = vld [vmem:[%s9 + $0x1] sm:$0x1]
  %v725 = vmul.f32 %v557, %v723
  %v726 = vsub.f32 %v724, %v725
  %v728 = vsel %vm559, %v723, 0
  %730 = vmatprep.subr.mxu0 0.0
  %731 = vmatpush1.msra.mxu0 %v558
  %732 = vmatprep.subr.mxu0 0.0
  %733 = vmatpush1.msra.mxu0 0.0
  %734 = vmatprep.subr.mxu0 0.0
  %735 = vmatpush1.msra.mxu0 0.0
  %736 = vmatprep.subr.mxu0 0.0
  %737 = vmatpush1.msra.mxu0 0.0
  %738 = vmatprep.subr.mxu0 0.0
  %739 = vmatpush1.msra.mxu0 0.0
  %740 = vmatprep.subr.mxu0 0.0
  %741 = vmatpush1.msra.mxu0 0.0
  %742 = vmatprep.subr.mxu0 0.0
  %743 = vmatpush1.msra.mxu0 0.0
  %744 = vmatprep.subr.mxu0 0.0
  %745 = vmatpush1.msra.mxu0 0.0
  %746 = vmatprep.subr.mxu0 0.0
  %747 = vmatpush1.msra.mxu0 0.0
  %748 = vmatprep.subr.mxu0 0.0
  %749 = vmatpush1.msra.mxu0 0.0
  %750 = vmatprep.subr.mxu0 0.0
  %751 = vmatpush1.msra.mxu0 0.0
  %752 = vmatprep.subr.mxu0 0.0
  %753 = vmatpush1.msra.mxu0 0.0
  %754 = vmatprep.subr.mxu0 0.0
  %755 = vmatpush1.msra.mxu0 0.0
  %756 = vmatprep.subr.mxu0 0.0
  %757 = vmatpush1.msra.mxu0 0.0
  %758 = vmatprep.subr.mxu0 0.0
  %759 = vmatpush1.msra.mxu0 0.0
  %760 = vmatprep.subr.mxu0 0.0
  %761 = vmatpush1.msra.mxu0 0.0
  %762 = vmatprep.subr.mxu0 0.0
  %763 = vmatpush1.msra.mxu0 0.0
  %764 = vmatprep.subr.mxu0 0.0
  %765 = vmatpush1.msra.mxu0 0.0
  %766 = vmatprep.subr.mxu0 0.0
  %767 = vmatpush1.msra.mxu0 0.0
  %768 = vmatprep.subr.mxu0 0.0
  %769 = vmatpush1.msra.mxu0 0.0
  %770 = vmatprep.subr.mxu0 0.0
  %771 = vmatpush1.msra.mxu0 0.0
  %772 = vmatprep.subr.mxu0 0.0
  %773 = vmatpush1.msra.mxu0 0.0
  %774 = vmatprep.subr.mxu0 0.0
  %775 = vmatpush1.msra.mxu0 0.0
  %776 = vmatprep.subr.mxu0 0.0
  %777 = vmatpush1.msra.mxu0 0.0
  %778 = vmatprep.subr.mxu0 0.0
  %779 = vmatpush1.msra.mxu0 0.0
  %780 = vmatprep.subr.mxu0 0.0
  %781 = vmatpush1.msra.mxu0 0.0
  %782 = vmatprep.subr.mxu0 0.0
  %783 = vmatpush1.msra.mxu0 0.0
  %784 = vmatprep.subr.mxu0 0.0
  %785 = vmatpush1.msra.mxu0 0.0
  %786 = vmatprep.subr.mxu0 0.0
  %787 = vmatpush1.msra.mxu0 0.0
  %788 = vmatprep.subr.mxu0 0.0
  %789 = vmatpush1.msra.mxu0 0.0
  %790 = vmatprep.subr.mxu0 0.0
  %791 = vmatpush1.msra.mxu0 0.0
  %792 = vmatprep.subr.mxu0 0.0
  %793 = vmatpush1.msra.mxu0 0.0
  %794 = vmatprep.mubr.f32.mxu0 0.0
  %795 = vmatmul.mubr.f32.gmra.mrb[0].mxu0 %v728
  %v796 = vpop.f32.mrb[0].mxu0
  %v797 = vadd.f32 0.0, %v796
  %v798 = vpop.f32.mrb[0].mxu0
  %799 = vdwg.mxu0
  %v801 = vsel %vm559, %v726, 0
  %803 = vmatprep.subr.mxu0 0.0
  %804 = vmatpush1.msra.mxu0 %v558
  %805 = vmatprep.subr.mxu0 0.0
  %806 = vmatpush1.msra.mxu0 0.0
  %807 = vmatprep.subr.mxu0 0.0
  %808 = vmatpush1.msra.mxu0 0.0
  %809 = vmatprep.subr.mxu0 0.0
  %810 = vmatpush1.msra.mxu0 0.0
  %811 = vmatprep.subr.mxu0 0.0
  %812 = vmatpush1.msra.mxu0 0.0
  %813 = vmatprep.subr.mxu0 0.0
  %814 = vmatpush1.msra.mxu0 0.0
  %815 = vmatprep.subr.mxu0 0.0
  %816 = vmatpush1.msra.mxu0 0.0
  %817 = vmatprep.subr.mxu0 0.0
  %818 = vmatpush1.msra.mxu0 0.0
  %819 = vmatprep.subr.mxu0 0.0
  %820 = vmatpush1.msra.mxu0 0.0
  %821 = vmatprep.subr.mxu0 0.0
  %822 = vmatpush1.msra.mxu0 0.0
  %823 = vmatprep.subr.mxu0 0.0
  %824 = vmatpush1.msra.mxu0 0.0
  %825 = vmatprep.subr.mxu0 0.0
  %826 = vmatpush1.msra.mxu0 0.0
  %827 = vmatprep.subr.mxu0 0.0
  %828 = vmatpush1.msra.mxu0 0.0
  %829 = vmatprep.subr.mxu0 0.0
  %830 = vmatpush1.msra.mxu0 0.0
  %831 = vmatprep.subr.mxu0 0.0
  %832 = vmatpush1.msra.mxu0 0.0
  %833 = vmatprep.subr.mxu0 0.0
  %834 = vmatpush1.msra.mxu0 0.0
  %835 = vmatprep.subr.mxu0 0.0
  %836 = vmatpush1.msra.mxu0 0.0
  %837 = vmatprep.subr.mxu0 0.0
  %838 = vmatpush1.msra.mxu0 0.0
  %839 = vmatprep.subr.mxu0 0.0
  %840 = vmatpush1.msra.mxu0 0.0
  %841 = vmatprep.subr.mxu0 0.0
  %842 = vmatpush1.msra.mxu0 0.0
  %843 = vmatprep.subr.mxu0 0.0
  %844 = vmatpush1.msra.mxu0 0.0
  %845 = vmatprep.subr.mxu0 0.0
  %846 = vmatpush1.msra.mxu0 0.0
  %847 = vmatprep.subr.mxu0 0.0
  %848 = vmatpush1.msra.mxu0 0.0
  %849 = vmatprep.subr.mxu0 0.0
  %850 = vmatpush1.msra.mxu0 0.0
  %851 = vmatprep.subr.mxu0 0.0
  %852 = vmatpush1.msra.mxu0 0.0
  %853 = vmatprep.subr.mxu0 0.0
  %854 = vmatpush1.msra.mxu0 0.0
  %855 = vmatprep.subr.mxu0 0.0
  %856 = vmatpush1.msra.mxu0 0.0
  %857 = vmatprep.subr.mxu0 0.0
  %858 = vmatpush1.msra.mxu0 0.0
  %859 = vmatprep.subr.mxu0 0.0
  %860 = vmatpush1.msra.mxu0 0.0
  %861 = vmatprep.subr.mxu0 0.0
  %862 = vmatpush1.msra.mxu0 0.0
  %863 = vmatprep.subr.mxu0 0.0
  %864 = vmatpush1.msra.mxu0 0.0
  %865 = vmatprep.subr.mxu0 0.0
  %866 = vmatpush1.msra.mxu0 0.0
  %867 = vmatprep.mubr.f32.mxu0 0.0
  %868 = vmatmul.mubr.f32.gmra.mrb[0].mxu0 %v801
  %v869 = vpop.f32.mrb[0].mxu0
  %v870 = vadd.f32 0.0, %v869
  %v871 = vpop.f32.mrb[0].mxu0
  %872 = vdwg.mxu0
  %v873 = vlaneseq
  %v874 = vshrl.u32 %v873, 7
  %v875 = vsub.s32 0, %v874
  %v876 = vrot.slane %v797, %v875
  %v877 = vmul.f32 %v461, %v876
  %v878 = vlaneseq
  %v879 = vshrl.u32 %v878, 7
  %v880 = vsub.s32 0, %v879
  %v881 = vrot.slane %v870, %v880
  %v882 = vadd.f32 %v877, %v881
  %v883 = vmax.f32 %v882, 0.0
  %884 = vst.msk [vmem:[#allocation3] sm:$0x3f] %vm462, %v883
  %v885 = vld [vmem:[#allocation3] sm:$0xf]
  %v886 = vld [vmem:[%s4] sm:$0xff]
  %v887 = vld [vmem:[%s4 + $0x8] sm:$0xff]
  %v888 = vld [vmem:[%s4 + $0x10] sm:$0xff]
  %v889 = vld [vmem:[%s4 + $0x18] sm:$0xff]
  %v890 = vld [vmem:[%s4 + $0x20] sm:$0xff]
  %v891 = vld [vmem:[%s4 + $0x28] sm:$0xff]
  %v892 = vld [vmem:[%s4 + $0x30] sm:$0xff]
  %v893 = vld [vmem:[%s4 + $0x38] sm:$0xff]
  %v894 = vld [vmem:[%s4 + $0x40] sm:$0xff]
  %v895 = vld [vmem:[%s4 + $0x48] sm:$0xff]
  %v896 = vld [vmem:[%s4 + $0x50] sm:$0xff]
  %v897 = vld [vmem:[%s4 + $0x58] sm:$0xff]
  %v898 = vld [vmem:[#allocation3 + $0x1] sm:$0xf]
  %s899 = scalar_lea.vmem %s4, 96
  %v900 = vld [vmem:[%s899] sm:$0xff]
  %v901 = vld [vmem:[%s899 + $0x8] sm:$0xff]
  %v902 = vld [vmem:[%s899 + $0x10] sm:$0xff]
  %v903 = vld [vmem:[%s899 + $0x18] sm:$0xff]
  %v904 = vld [vmem:[%s899 + $0x20] sm:$0xff]
  %v905 = vld [vmem:[%s899 + $0x28] sm:$0xff]
  %v906 = vld [vmem:[%s899 + $0x30] sm:$0xff]
  %v907 = vld [vmem:[%s899 + $0x38] sm:$0xff]
  %v908 = vld [vmem:[%s899 + $0x40] sm:$0xff]
  %v909 = vld [vmem:[%s899 + $0x48] sm:$0xff]
  %v910 = vld [vmem:[%s899 + $0x50] sm:$0xff]
  %v911 = vld [vmem:[%s899 + $0x58] sm:$0xff]
  %v913 = vsel %vm482, %v898, 0
  %915 = vmatprep.subr.mxu0 0.0
  %916 = vmatpush1.msra.mxu0 %v900
  %917 = vmatprep.subr.mxu0 0.0
  %918 = vmatpush1.msra.mxu0 %v901
  %919 = vmatprep.subr.mxu0 0.0
  %920 = vmatpush1.msra.mxu0 %v902
  %921 = vmatprep.subr.mxu0 0.0
  %922 = vmatpush1.msra.mxu0 %v903
  %923 = vmatprep.subr.mxu0 0.0
  %924 = vmatpush1.msra.mxu0 %v904
  %925 = vmatprep.subr.mxu0 0.0
  %926 = vmatpush1.msra.mxu0 %v905
  %927 = vmatprep.subr.mxu0 0.0
  %928 = vmatpush1.msra.mxu0 %v906
  %929 = vmatprep.subr.mxu0 0.0
  %930 = vmatpush1.msra.mxu0 %v907
  %931 = vmatprep.subr.mxu0 0.0
  %932 = vmatpush1.msra.mxu0 %v908
  %933 = vmatprep.subr.mxu0 0.0
  %934 = vmatpush1.msra.mxu0 %v909
  %935 = vmatprep.subr.mxu0 0.0
  %936 = vmatpush1.msra.mxu0 %v910
  %937 = vmatprep.subr.mxu0 0.0
  %938 = vmatpush1.msra.mxu0 %v911
  %939 = vmatprep.subr.mxu0 0.0
  %940 = vmatpush1.msra.mxu0 0.0
  %941 = vmatprep.subr.mxu0 0.0
  %942 = vmatpush1.msra.mxu0 0.0
  %943 = vmatprep.subr.mxu0 0.0
  %944 = vmatpush1.msra.mxu0 0.0
  %945 = vmatprep.subr.mxu0 0.0
  %946 = vmatpush1.msra.mxu0 0.0
  %947 = vmatprep.subr.mxu0 0.0
  %948 = vmatpush1.msra.mxu0 0.0
  %949 = vmatprep.subr.mxu0 0.0
  %950 = vmatpush1.msra.mxu0 0.0
  %951 = vmatprep.subr.mxu0 0.0
  %952 = vmatpush1.msra.mxu0 0.0
  %953 = vmatprep.subr.mxu0 0.0
  %954 = vmatpush1.msra.mxu0 0.0
  %955 = vmatprep.subr.mxu0 0.0
  %956 = vmatpush1.msra.mxu0 0.0
  %957 = vmatprep.subr.mxu0 0.0
  %958 = vmatpush1.msra.mxu0 0.0
  %959 = vmatprep.subr.mxu0 0.0
  %960 = vmatpush1.msra.mxu0 0.0
  %961 = vmatprep.subr.mxu0 0.0
  %962 = vmatpush1.msra.mxu0 0.0
  %963 = vmatprep.subr.mxu0 0.0
  %964 = vmatpush1.msra.mxu0 0.0
  %965 = vmatprep.subr.mxu0 0.0
  %966 = vmatpush1.msra.mxu0 0.0
  %967 = vmatprep.subr.mxu0 0.0
  %968 = vmatpush1.msra.mxu0 0.0
  %969 = vmatprep.subr.mxu0 0.0
  %970 = vmatpush1.msra.mxu0 0.0
  %971 = vmatprep.subr.mxu0 0.0
  %972 = vmatpush1.msra.mxu0 0.0
  %973 = vmatprep.subr.mxu0 0.0
  %974 = vmatpush1.msra.mxu0 0.0
  %975 = vmatprep.subr.mxu0 0.0
  %976 = vmatpush1.msra.mxu0 0.0
  %977 = vmatprep.subr.mxu0 0.0
  %978 = vmatpush1.msra.mxu0 0.0
  %979 = vmatprep.mubr.f32.mxu0 0.0
  %980 = vmatmul.mubr.f32.gmra.mrb[0].mxu0 %v913
  %v981 = vpop.f32.mrb[0].mxu0
  %v982 = vadd.f32 0.0, %v981
  %v983 = vpop.f32.mrb[0].mxu0
  %984 = vdwg.mxu0
  %v986 = vsel %vm482, %v885, 0
  %988 = vmatprep.subr.mxu0 0.0
  %989 = vmatpush1.msra.mxu0 %v886
  %990 = vmatprep.subr.mxu0 0.0
  %991 = vmatpush1.msra.mxu0 %v887
  %992 = vmatprep.subr.mxu0 0.0
  %993 = vmatpush1.msra.mxu0 %v888
  %994 = vmatprep.subr.mxu0 0.0
  %995 = vmatpush1.msra.mxu0 %v889
  %996 = vmatprep.subr.mxu0 0.0
  %997 = vmatpush1.msra.mxu0 %v890
  %998 = vmatprep.subr.mxu0 0.0
  %999 = vmatpush1.msra.mxu0 %v891
  %1000 = vmatprep.subr.mxu0 0.0
  %1001 = vmatpush1.msra.mxu0 %v892
  %1002 = vmatprep.subr.mxu0 0.0
  %1003 = vmatpush1.msra.mxu0 %v893
  %1004 = vmatprep.subr.mxu0 0.0
  %1005 = vmatpush1.msra.mxu0 %v894
  %1006 = vmatprep.subr.mxu0 0.0
  %1007 = vmatpush1.msra.mxu0 %v895
  %1008 = vmatprep.subr.mxu0 0.0
  %1009 = vmatpush1.msra.mxu0 %v896
  %1010 = vmatprep.subr.mxu0 0.0
  %1011 = vmatpush1.msra.mxu0 %v897
  %1012 = vmatprep.subr.mxu0 0.0
  %1013 = vmatpush1.msra.mxu0 0.0
  %1014 = vmatprep.subr.mxu0 0.0
  %1015 = vmatpush1.msra.mxu0 0.0
  %1016 = vmatprep.subr.mxu0 0.0
  %1017 = vmatpush1.msra.mxu0 0.0
  %1018 = vmatprep.subr.mxu0 0.0
  %1019 = vmatpush1.msra.mxu0 0.0
  %1020 = vmatprep.subr.mxu0 0.0
  %1021 = vmatpush1.msra.mxu0 0.0
  %1022 = vmatprep.subr.mxu0 0.0
  %1023 = vmatpush1.msra.mxu0 0.0
  %1024 = vmatprep.subr.mxu0 0.0
  %1025 = vmatpush1.msra.mxu0 0.0
  %1026 = vmatprep.subr.mxu0 0.0
  %1027 = vmatpush1.msra.mxu0 0.0
  %1028 = vmatprep.subr.mxu0 0.0
  %1029 = vmatpush1.msra.mxu0 0.0
  %1030 = vmatprep.subr.mxu0 0.0
  %1031 = vmatpush1.msra.mxu0 0.0
  %1032 = vmatprep.subr.mxu0 0.0
  %1033 = vmatpush1.msra.mxu0 0.0
  %1034 = vmatprep.subr.mxu0 0.0
  %1035 = vmatpush1.msra.mxu0 0.0
  %1036 = vmatprep.subr.mxu0 0.0
  %1037 = vmatpush1.msra.mxu0 0.0
  %1038 = vmatprep.subr.mxu0 0.0
  %1039 = vmatpush1.msra.mxu0 0.0
  %1040 = vmatprep.subr.mxu0 0.0
  %1041 = vmatpush1.msra.mxu0 0.0
  %1042 = vmatprep.subr.mxu0 0.0
  %1043 = vmatpush1.msra.mxu0 0.0
  %1044 = vmatprep.subr.mxu0 0.0
  %1045 = vmatpush1.msra.mxu0 0.0
  %1046 = vmatprep.subr.mxu0 0.0
  %1047 = vmatpush1.msra.mxu0 0.0
  %1048 = vmatprep.subr.mxu0 0.0
  %1049 = vmatpush1.msra.mxu0 0.0
  %1050 = vmatprep.subr.mxu0 0.0
  %1051 = vmatpush1.msra.mxu0 0.0
  %1052 = vmatprep.mubr.f32.mxu0 0.0
  %1053 = vmatmul.mubr.f32.gmra.mrb[0].mxu0 %v986
  %v1054 = vpop.f32.mrb[0].mxu0
  %v1055 = vadd.f32 %v982, %v1054
  %v1056 = vpop.f32.mrb[0].mxu0
  %1057 = vdwg.mxu0
  %v1058 = vld [vmem:[#allocation3 + $0x2] sm:$0xf]
  %s1059 = scalar_lea.vmem %s4, 192
  %v1060 = vld [vmem:[%s1059] sm:$0xff]
  %v1061 = vld [vmem:[%s1059 + $0x8] sm:$0xff]
  %v1062 = vld [vmem:[%s1059 + $0x10] sm:$0xff]
  %v1063 = vld [vmem:[%s1059 + $0x18] sm:$0xff]
  %v1064 = vld [vmem:[%s1059 + $0x20] sm:$0xff]
  %v1065 = vld [vmem:[%s1059 + $0x28] sm:$0xff]
  %v1066 = vld [vmem:[%s1059 + $0x30] sm:$0xff]
  %v1067 = vld [vmem:[%s1059 + $0x38] sm:$0xff]
  %v1068 = vld [vmem:[%s1059 + $0x40] sm:$0xff]
  %v1069 = vld [vmem:[%s1059 + $0x48] sm:$0xff]
  %v1070 = vld [vmem:[%s1059 + $0x50] sm:$0xff]
  %v1071 = vld [vmem:[%s1059 + $0x58] sm:$0xff]
  %v1073 = vsel %vm482, %v1058, 0
  %1075 = vmatprep.subr.mxu0 0.0
  %1076 = vmatpush1.msra.mxu0 %v1060
  %1077 = vmatprep.subr.mxu0 0.0
  %1078 = vmatpush1.msra.mxu0 %v1061
  %1079 = vmatprep.subr.mxu0 0.0
  %1080 = vmatpush1.msra.mxu0 %v1062
  %1081 = vmatprep.subr.mxu0 0.0
  %1082 = vmatpush1.msra.mxu0 %v1063
  %1083 = vmatprep.subr.mxu0 0.0
  %1084 = vmatpush1.msra.mxu0 %v1064
  %1085 = vmatprep.subr.mxu0 0.0
  %1086 = vmatpush1.msra.mxu0 %v1065
  %1087 = vmatprep.subr.mxu0 0.0
  %1088 = vmatpush1.msra.mxu0 %v1066
  %1089 = vmatprep.subr.mxu0 0.0
  %1090 = vmatpush1.msra.mxu0 %v1067
  %1091 = vmatprep.subr.mxu0 0.0
  %1092 = vmatpush1.msra.mxu0 %v1068
  %1093 = vmatprep.subr.mxu0 0.0
  %1094 = vmatpush1.msra.mxu0 %v1069
  %1095 = vmatprep.subr.mxu0 0.0
  %1096 = vmatpush1.msra.mxu0 %v1070
  %1097 = vmatprep.subr.mxu0 0.0
  %1098 = vmatpush1.msra.mxu0 %v1071
  %1099 = vmatprep.subr.mxu0 0.0
  %1100 = vmatpush1.msra.mxu0 0.0
  %1101 = vmatprep.subr.mxu0 0.0
  %1102 = vmatpush1.msra.mxu0 0.0
  %1103 = vmatprep.subr.mxu0 0.0
  %1104 = vmatpush1.msra.mxu0 0.0
  %1105 = vmatprep.subr.mxu0 0.0
  %1106 = vmatpush1.msra.mxu0 0.0
  %1107 = vmatprep.subr.mxu0 0.0
  %1108 = vmatpush1.msra.mxu0 0.0
  %1109 = vmatprep.subr.mxu0 0.0
  %1110 = vmatpush1.msra.mxu0 0.0
  %1111 = vmatprep.subr.mxu0 0.0
  %1112 = vmatpush1.msra.mxu0 0.0
  %1113 = vmatprep.subr.mxu0 0.0
  %1114 = vmatpush1.msra.mxu0 0.0
  %1115 = vmatprep.subr.mxu0 0.0
  %1116 = vmatpush1.msra.mxu0 0.0
  %1117 = vmatprep.subr.mxu0 0.0
  %1118 = vmatpush1.msra.mxu0 0.0
  %1119 = vmatprep.subr.mxu0 0.0
  %1120 = vmatpush1.msra.mxu0 0.0
  %1121 = vmatprep.subr.mxu0 0.0
  %1122 = vmatpush1.msra.mxu0 0.0
  %1123 = vmatprep.subr.mxu0 0.0
  %1124 = vmatpush1.msra.mxu0 0.0
  %1125 = vmatprep.subr.mxu0 0.0
  %1126 = vmatpush1.msra.mxu0 0.0
  %1127 = vmatprep.subr.mxu0 0.0
  %1128 = vmatpush1.msra.mxu0 0.0
  %1129 = vmatprep.subr.mxu0 0.0
  %1130 = vmatpush1.msra.mxu0 0.0
  %1131 = vmatprep.subr.mxu0 0.0
  %1132 = vmatpush1.msra.mxu0 0.0
  %1133 = vmatprep.subr.mxu0 0.0
  %1134 = vmatpush1.msra.mxu0 0.0
  %1135 = vmatprep.subr.mxu0 0.0
  %1136 = vmatpush1.msra.mxu0 0.0
  %1137 = vmatprep.subr.mxu0 0.0
  %1138 = vmatpush1.msra.mxu0 0.0
  %1139 = vmatprep.mubr.f32.mxu0 0.0
  %1140 = vmatmul.mubr.f32.gmra.mrb[0].mxu0 %v1073
  %v1141 = vpop.f32.mrb[0].mxu0
  %v1142 = vadd.f32 0.0, %v1141
  %v1143 = vpop.f32.mrb[0].mxu0
  %1144 = vdwg.mxu0
  %v1145 = vadd.f32 %v1055, %v1142
  %vm1146 = vcmask 519168
  %v1147 = vsel %vm1146, %v1145, 0.0
  %v1148 = vrot.slane %v1147, 4
  %v1149 = vadd.f32 %v1147, %v1148
  %v1150 = vrot.slane %v1149, 2
  %v1151 = vadd.f32 %v1149, %v1150
  %v1152 = vrot.slane %v1151, 1
  %v1153 = vadd.f32 %v1151, %v1152
  %v1154 = vld [vmem:[%s7] sm:$0xff]
  %v1155 = vld [vmem:[%s7 + $0x8] sm:$0xff]
  %v1156 = vld [vmem:[%s7 + $0x10] sm:$0xff]
  %v1157 = vld [vmem:[%s7 + $0x18] sm:$0xff]
  %v1158 = vld [vmem:[%s7 + $0x20] sm:$0xff]
  %v1159 = vld [vmem:[%s7 + $0x28] sm:$0xff]
  %v1160 = vld [vmem:[%s7 + $0x30] sm:$0xff]
  %v1161 = vld [vmem:[%s7 + $0x38] sm:$0xff]
  %v1163 = vsel %vm211, %v1153, 0
  %1165 = vmatprep.subr.mxu0 0.0
  %1166 = vmatpush1.msra.mxu0 %v1154
  %1167 = vmatprep.subr.mxu0 0.0
  %1168 = vmatpush1.msra.mxu0 %v1155
  %1169 = vmatprep.subr.mxu0 0.0
  %1170 = vmatpush1.msra.mxu0 %v1156
  %1171 = vmatprep.subr.mxu0 0.0
  %1172 = vmatpush1.msra.mxu0 %v1157
  %1173 = vmatprep.subr.mxu0 0.0
  %1174 = vmatpush1.msra.mxu0 %v1158
  %1175 = vmatprep.subr.mxu0 0.0
  %1176 = vmatpush1.msra.mxu0 %v1159
  %1177 = vmatprep.subr.mxu0 0.0
  %1178 = vmatpush1.msra.mxu0 %v1160
  %1179 = vmatprep.subr.mxu0 0.0
  %1180 = vmatpush1.msra.mxu0 %v1161
  %1181 = vmatprep.subr.mxu0 0.0
  %1182 = vmatpush1.msra.mxu0 0.0
  %1183 = vmatprep.subr.mxu0 0.0
  %1184 = vmatpush1.msra.mxu0 0.0
  %1185 = vmatprep.subr.mxu0 0.0
  %1186 = vmatpush1.msra.mxu0 0.0
  %1187 = vmatprep.subr.mxu0 0.0
  %1188 = vmatpush1.msra.mxu0 0.0
  %1189 = vmatprep.subr.mxu0 0.0
  %1190 = vmatpush1.msra.mxu0 0.0
  %1191 = vmatprep.subr.mxu0 0.0
  %1192 = vmatpush1.msra.mxu0 0.0
  %1193 = vmatprep.subr.mxu0 0.0
  %1194 = vmatpush1.msra.mxu0 0.0
  %1195 = vmatprep.subr.mxu0 0.0
  %1196 = vmatpush1.msra.mxu0 0.0
  %1197 = vmatprep.subr.mxu0 0.0
  %1198 = vmatpush1.msra.mxu0 0.0
  %1199 = vmatprep.subr.mxu0 0.0
  %1200 = vmatpush1.msra.mxu0 0.0
  %1201 = vmatprep.subr.mxu0 0.0
  %1202 = vmatpush1.msra.mxu0 0.0
  %1203 = vmatprep.subr.mxu0 0.0
  %1204 = vmatpush1.msra.mxu0 0.0
  %1205 = vmatprep.subr.mxu0 0.0
  %1206 = vmatpush1.msra.mxu0 0.0
  %1207 = vmatprep.subr.mxu0 0.0
  %1208 = vmatpush1.msra.mxu0 0.0
  %1209 = vmatprep.subr.mxu0 0.0
  %1210 = vmatpush1.msra.mxu0 0.0
  %1211 = vmatprep.subr.mxu0 0.0
  %1212 = vmatpush1.msra.mxu0 0.0
  %1213 = vmatprep.subr.mxu0 0.0
  %1214 = vmatpush1.msra.mxu0 0.0
  %1215 = vmatprep.subr.mxu0 0.0
  %1216 = vmatpush1.msra.mxu0 0.0
  %1217 = vmatprep.subr.mxu0 0.0
  %1218 = vmatpush1.msra.mxu0 0.0
  %1219 = vmatprep.subr.mxu0 0.0
  %1220 = vmatpush1.msra.mxu0 0.0
  %1221 = vmatprep.subr.mxu0 0.0
  %1222 = vmatpush1.msra.mxu0 0.0
  %1223 = vmatprep.subr.mxu0 0.0
  %1224 = vmatpush1.msra.mxu0 0.0
  %1225 = vmatprep.subr.mxu0 0.0
  %1226 = vmatpush1.msra.mxu0 0.0
  %1227 = vmatprep.subr.mxu0 0.0
  %1228 = vmatpush1.msra.mxu0 0.0
  %1229 = vmatprep.mubr.f32.mxu0 0.0
  %1230 = vmatmul.mubr.f32.gmra.mrb[0].mxu0 %v1163
  %v1231 = vpop.f32.mrb[0].mxu0
  %v1232 = vadd.f32 0.0, %v1231
  %v1233 = vpop.f32.mrb[0].mxu0
  %1234 = vdwg.mxu0
  %v1235 = vrcp.pop 32.0
  %v1236 = vmul.f32 %v1232, %v1235
  %v1237 = vld [vmem:[%s8] sm:$0xff]
  %v1239 = vsel %vm559, %v1236, 0
  %1241 = vmatprep.subr.mxu0 0.0
  %1242 = vmatpush1.msra.mxu0 %v1237
  %1243 = vmatprep.subr.mxu0 0.0
  %1244 = vmatpush1.msra.mxu0 0.0
  %1245 = vmatprep.subr.mxu0 0.0
  %1246 = vmatpush1.msra.mxu0 0.0
  %1247 = vmatprep.subr.mxu0 0.0
  %1248 = vmatpush1.msra.mxu0 0.0
  %1249 = vmatprep.subr.mxu0 0.0
  %1250 = vmatpush1.msra.mxu0 0.0
  %1251 = vmatprep.subr.mxu0 0.0
  %1252 = vmatpush1.msra.mxu0 0.0
  %1253 = vmatprep.subr.mxu0 0.0
  %1254 = vmatpush1.msra.mxu0 0.0
  %1255 = vmatprep.subr.mxu0 0.0
  %1256 = vmatpush1.msra.mxu0 0.0
  %1257 = vmatprep.subr.mxu0 0.0
  %1258 = vmatpush1.msra.mxu0 0.0
  %1259 = vmatprep.subr.mxu0 0.0
  %1260 = vmatpush1.msra.mxu0 0.0
  %1261 = vmatprep.subr.mxu0 0.0
  %1262 = vmatpush1.msra.mxu0 0.0
  %1263 = vmatprep.subr.mxu0 0.0
  %1264 = vmatpush1.msra.mxu0 0.0
  %1265 = vmatprep.subr.mxu0 0.0
  %1266 = vmatpush1.msra.mxu0 0.0
  %1267 = vmatprep.subr.mxu0 0.0
  %1268 = vmatpush1.msra.mxu0 0.0
  %1269 = vmatprep.subr.mxu0 0.0
  %1270 = vmatpush1.msra.mxu0 0.0
  %1271 = vmatprep.subr.mxu0 0.0
  %1272 = vmatpush1.msra.mxu0 0.0
  %1273 = vmatprep.subr.mxu0 0.0
  %1274 = vmatpush1.msra.mxu0 0.0
  %1275 = vmatprep.subr.mxu0 0.0
  %1276 = vmatpush1.msra.mxu0 0.0
  %1277 = vmatprep.subr.mxu0 0.0
  %1278 = vmatpush1.msra.mxu0 0.0
  %1279 = vmatprep.subr.mxu0 0.0
  %1280 = vmatpush1.msra.mxu0 0.0
  %1281 = vmatprep.subr.mxu0 0.0
  %1282 = vmatpush1.msra.mxu0 0.0
  %1283 = vmatprep.subr.mxu0 0.0
  %1284 = vmatpush1.msra.mxu0 0.0
  %1285 = vmatprep.subr.mxu0 0.0
  %1286 = vmatpush1.msra.mxu0 0.0
  %1287 = vmatprep.subr.mxu0 0.0
  %1288 = vmatpush1.msra.mxu0 0.0
  %1289 = vmatprep.subr.mxu0 0.0
  %1290 = vmatpush1.msra.mxu0 0.0
  %1291 = vmatprep.subr.mxu0 0.0
  %1292 = vmatpush1.msra.mxu0 0.0
  %1293 = vmatprep.subr.mxu0 0.0
  %1294 = vmatpush1.msra.mxu0 0.0
  %1295 = vmatprep.subr.mxu0 0.0
  %1296 = vmatpush1.msra.mxu0 0.0
  %1297 = vmatprep.subr.mxu0 0.0
  %1298 = vmatpush1.msra.mxu0 0.0
  %1299 = vmatprep.subr.mxu0 0.0
  %1300 = vmatpush1.msra.mxu0 0.0
  %1301 = vmatprep.subr.mxu0 0.0
  %1302 = vmatpush1.msra.mxu0 0.0
  %1303 = vmatprep.subr.mxu0 0.0
  %1304 = vmatpush1.msra.mxu0 0.0
  %1305 = vmatprep.mubr.f32.mxu0 0.0
  %1306 = vmatmul.mubr.f32.gmra.mrb[0].mxu0 %v1239
  %v1307 = vpop.f32.mrb[0].mxu0
  %v1308 = vadd.f32 0.0, %v1307
  %v1309 = vpop.f32.mrb[0].mxu0
  %1310 = vdwg.mxu0
  %v1311 = vlaneseq
  %v1312 = vshrl.u32 %v1311, 7
  %v1313 = vsub.s32 0, %v1312
  %v1314 = vrot.slane %v1308, %v1313
  %v1315 = vsub.f32 %v1145, %v1314
  %v1316 = vmul.f32 %v1315, %v1315
  %v1317 = vsel %vm1146, %v1316, 0.0
  %v1318 = vrot.slane %v1317, 4
  %v1319 = vadd.f32 %v1317, %v1318
  %v1320 = vrot.slane %v1319, 2
  %v1321 = vadd.f32 %v1319, %v1320
  %v1322 = vrot.slane %v1321, 1
  %v1323 = vadd.f32 %v1321, %v1322
  %v1325 = vsel %vm211, %v1323, 0
  %1327 = vmatprep.subr.mxu0 0.0
  %1328 = vmatpush1.msra.mxu0 %v1154
  %1329 = vmatprep.subr.mxu0 0.0
  %1330 = vmatpush1.msra.mxu0 %v1155
  %1331 = vmatprep.subr.mxu0 0.0
  %1332 = vmatpush1.msra.mxu0 %v1156
  %1333 = vmatprep.subr.mxu0 0.0
  %1334 = vmatpush1.msra.mxu0 %v1157
  %1335 = vmatprep.subr.mxu0 0.0
  %1336 = vmatpush1.msra.mxu0 %v1158
  %1337 = vmatprep.subr.mxu0 0.0
  %1338 = vmatpush1.msra.mxu0 %v1159
  %1339 = vmatprep.subr.mxu0 0.0
  %1340 = vmatpush1.msra.mxu0 %v1160
  %1341 = vmatprep.subr.mxu0 0.0
  %1342 = vmatpush1.msra.mxu0 %v1161
  %1343 = vmatprep.subr.mxu0 0.0
  %1344 = vmatpush1.msra.mxu0 0.0
  %1345 = vmatprep.subr.mxu0 0.0
  %1346 = vmatpush1.msra.mxu0 0.0
  %1347 = vmatprep.subr.mxu0 0.0
  %1348 = vmatpush1.msra.mxu0 0.0
  %1349 = vmatprep.subr.mxu0 0.0
  %1350 = vmatpush1.msra.mxu0 0.0
  %1351 = vmatprep.subr.mxu0 0.0
  %1352 = vmatpush1.msra.mxu0 0.0
  %1353 = vmatprep.subr.mxu0 0.0
  %1354 = vmatpush1.msra.mxu0 0.0
  %1355 = vmatprep.subr.mxu0 0.0
  %1356 = vmatpush1.msra.mxu0 0.0
  %1357 = vmatprep.subr.mxu0 0.0
  %1358 = vmatpush1.msra.mxu0 0.0
  %1359 = vmatprep.subr.mxu0 0.0
  %1360 = vmatpush1.msra.mxu0 0.0
  %1361 = vmatprep.subr.mxu0 0.0
  %1362 = vmatpush1.msra.mxu0 0.0
  %1363 = vmatprep.subr.mxu0 0.0
  %1364 = vmatpush1.msra.mxu0 0.0
  %1365 = vmatprep.subr.mxu0 0.0
  %1366 = vmatpush1.msra.mxu0 0.0
  %1367 = vmatprep.subr.mxu0 0.0
  %1368 = vmatpush1.msra.mxu0 0.0
  %1369 = vmatprep.subr.mxu0 0.0
  %1370 = vmatpush1.msra.mxu0 0.0
  %1371 = vmatprep.subr.mxu0 0.0
  %1372 = vmatpush1.msra.mxu0 0.0
  %1373 = vmatprep.subr.mxu0 0.0
  %1374 = vmatpush1.msra.mxu0 0.0
  %1375 = vmatprep.subr.mxu0 0.0
  %1376 = vmatpush1.msra.mxu0 0.0
  %1377 = vmatprep.subr.mxu0 0.0
  %1378 = vmatpush1.msra.mxu0 0.0
  %1379 = vmatprep.subr.mxu0 0.0
  %1380 = vmatpush1.msra.mxu0 0.0
  %1381 = vmatprep.subr.mxu0 0.0
  %1382 = vmatpush1.msra.mxu0 0.0
  %1383 = vmatprep.subr.mxu0 0.0
  %1384 = vmatpush1.msra.mxu0 0.0
  %1385 = vmatprep.subr.mxu0 0.0
  %1386 = vmatpush1.msra.mxu0 0.0
  %1387 = vmatprep.subr.mxu0 0.0
  %1388 = vmatpush1.msra.mxu0 0.0
  %1389 = vmatprep.subr.mxu0 0.0
  %1390 = vmatpush1.msra.mxu0 0.0
  %1391 = vmatprep.mubr.f32.mxu0 0.0
  %1392 = vmatmul.mubr.f32.gmra.mrb[0].mxu0 %v1325
  %v1393 = vpop.f32.mrb[0].mxu0
  %v1394 = vadd.f32 0.0, %v1393
  %v1395 = vpop.f32.mrb[0].mxu0
  %1396 = vdwg.mxu0
  %v1397 = vmul.f32 %v1394, %v1235
  %v1398 = vld [vmem:[%s9 + $0x2] sm:$0x1]
  %v1399 = vadd.f32 %v1397, 1e-05
  %v1400 = vrsqrt.pop %v1399
  %v1401 = vmul.f32 %v1398, %v1400
  %v1402 = vld [vmem:[%s9 + $0x3] sm:$0x1]
  %v1403 = vmul.f32 %v1236, %v1401
  %v1404 = vsub.f32 %v1402, %v1403
  %v1406 = vsel %vm559, %v1401, 0
  %1408 = vmatprep.subr.mxu0 0.0
  %1409 = vmatpush1.msra.mxu0 %v1237
  %1410 = vmatprep.subr.mxu0 0.0
  %1411 = vmatpush1.msra.mxu0 0.0
  %1412 = vmatprep.subr.mxu0 0.0
  %1413 = vmatpush1.msra.mxu0 0.0
  %1414 = vmatprep.subr.mxu0 0.0
  %1415 = vmatpush1.msra.mxu0 0.0
  %1416 = vmatprep.subr.mxu0 0.0
  %1417 = vmatpush1.msra.mxu0 0.0
  %1418 = vmatprep.subr.mxu0 0.0
  %1419 = vmatpush1.msra.mxu0 0.0
  %1420 = vmatprep.subr.mxu0 0.0
  %1421 = vmatpush1.msra.mxu0 0.0
  %1422 = vmatprep.subr.mxu0 0.0
  %1423 = vmatpush1.msra.mxu0 0.0
  %1424 = vmatprep.subr.mxu0 0.0
  %1425 = vmatpush1.msra.mxu0 0.0
  %1426 = vmatprep.subr.mxu0 0.0
  %1427 = vmatpush1.msra.mxu0 0.0
  %1428 = vmatprep.subr.mxu0 0.0
  %1429 = vmatpush1.msra.mxu0 0.0
  %1430 = vmatprep.subr.mxu0 0.0
  %1431 = vmatpush1.msra.mxu0 0.0
  %1432 = vmatprep.subr.mxu0 0.0
  %1433 = vmatpush1.msra.mxu0 0.0
  %1434 = vmatprep.subr.mxu0 0.0
  %1435 = vmatpush1.msra.mxu0 0.0
  %1436 = vmatprep.subr.mxu0 0.0
  %1437 = vmatpush1.msra.mxu0 0.0
  %1438 = vmatprep.subr.mxu0 0.0
  %1439 = vmatpush1.msra.mxu0 0.0
  %1440 = vmatprep.subr.mxu0 0.0
  %1441 = vmatpush1.msra.mxu0 0.0
  %1442 = vmatprep.subr.mxu0 0.0
  %1443 = vmatpush1.msra.mxu0 0.0
  %1444 = vmatprep.subr.mxu0 0.0
  %1445 = vmatpush1.msra.mxu0 0.0
  %1446 = vmatprep.subr.mxu0 0.0
  %1447 = vmatpush1.msra.mxu0 0.0
  %1448 = vmatprep.subr.mxu0 0.0
  %1449 = vmatpush1.msra.mxu0 0.0
  %1450 = vmatprep.subr.mxu0 0.0
  %1451 = vmatpush1.msra.mxu0 0.0
  %1452 = vmatprep.subr.mxu0 0.0
  %1453 = vmatpush1.msra.mxu0 0.0
  %1454 = vmatprep.subr.mxu0 0.0
  %1455 = vmatpush1.msra.mxu0 0.0
  %1456 = vmatprep.subr.mxu0 0.0
  %1457 = vmatpush1.msra.mxu0 0.0
  %1458 = vmatprep.subr.mxu0 0.0
  %1459 = vmatpush1.msra.mxu0 0.0
  %1460 = vmatprep.subr.mxu0 0.0
  %1461 = vmatpush1.msra.mxu0 0.0
  %1462 = vmatprep.subr.mxu0 0.0
  %1463 = vmatpush1.msra.mxu0 0.0
  %1464 = vmatprep.subr.mxu0 0.0
  %1465 = vmatpush1.msra.mxu0 0.0
  %1466 = vmatprep.subr.mxu0 0.0
  %1467 = vmatpush1.msra.mxu0 0.0
  %1468 = vmatprep.subr.mxu0 0.0
  %1469 = vmatpush1.msra.mxu0 0.0
  %1470 = vmatprep.subr.mxu0 0.0
  %1471 = vmatpush1.msra.mxu0 0.0
  %1472 = vmatprep.mubr.f32.mxu0 0.0
  %1473 = vmatmul.mubr.f32.gmra.mrb[0].mxu0 %v1406
  %v1474 = vpop.f32.mrb[0].mxu0
  %v1475 = vadd.f32 0.0, %v1474
  %v1476 = vpop.f32.mrb[0].mxu0
  %1477 = vdwg.mxu0
  %v1479 = vsel %vm559, %v1404, 0
  %1481 = vmatprep.subr.mxu0 0.0
  %1482 = vmatpush1.msra.mxu0 %v1237
  %1483 = vmatprep.subr.mxu0 0.0
  %1484 = vmatpush1.msra.mxu0 0.0
  %1485 = vmatprep.subr.mxu0 0.0
  %1486 = vmatpush1.msra.mxu0 0.0
  %1487 = vmatprep.subr.mxu0 0.0
  %1488 = vmatpush1.msra.mxu0 0.0
  %1489 = vmatprep.subr.mxu0 0.0
  %1490 = vmatpush1.msra.mxu0 0.0
  %1491 = vmatprep.subr.mxu0 0.0
  %1492 = vmatpush1.msra.mxu0 0.0
  %1493 = vmatprep.subr.mxu0 0.0
  %1494 = vmatpush1.msra.mxu0 0.0
  %1495 = vmatprep.subr.mxu0 0.0
  %1496 = vmatpush1.msra.mxu0 0.0
  %1497 = vmatprep.subr.mxu0 0.0
  %1498 = vmatpush1.msra.mxu0 0.0
  %1499 = vmatprep.subr.mxu0 0.0
  %1500 = vmatpush1.msra.mxu0 0.0
  %1501 = vmatprep.subr.mxu0 0.0
  %1502 = vmatpush1.msra.mxu0 0.0
  %1503 = vmatprep.subr.mxu0 0.0
  %1504 = vmatpush1.msra.mxu0 0.0
  %1505 = vmatprep.subr.mxu0 0.0
  %1506 = vmatpush1.msra.mxu0 0.0
  %1507 = vmatprep.subr.mxu0 0.0
  %1508 = vmatpush1.msra.mxu0 0.0
  %1509 = vmatprep.subr.mxu0 0.0
  %1510 = vmatpush1.msra.mxu0 0.0
  %1511 = vmatprep.subr.mxu0 0.0
  %1512 = vmatpush1.msra.mxu0 0.0
  %1513 = vmatprep.subr.mxu0 0.0
  %1514 = vmatpush1.msra.mxu0 0.0
  %1515 = vmatprep.subr.mxu0 0.0
  %1516 = vmatpush1.msra.mxu0 0.0
  %1517 = vmatprep.subr.mxu0 0.0
  %1518 = vmatpush1.msra.mxu0 0.0
  %1519 = vmatprep.subr.mxu0 0.0
  %1520 = vmatpush1.msra.mxu0 0.0
  %1521 = vmatprep.subr.mxu0 0.0
  %1522 = vmatpush1.msra.mxu0 0.0
  %1523 = vmatprep.subr.mxu0 0.0
  %1524 = vmatpush1.msra.mxu0 0.0
  %1525 = vmatprep.subr.mxu0 0.0
  %1526 = vmatpush1.msra.mxu0 0.0
  %1527 = vmatprep.subr.mxu0 0.0
  %1528 = vmatpush1.msra.mxu0 0.0
  %1529 = vmatprep.subr.mxu0 0.0
  %1530 = vmatpush1.msra.mxu0 0.0
  %1531 = vmatprep.subr.mxu0 0.0
  %1532 = vmatpush1.msra.mxu0 0.0
  %1533 = vmatprep.subr.mxu0 0.0
  %1534 = vmatpush1.msra.mxu0 0.0
  %1535 = vmatprep.subr.mxu0 0.0
  %1536 = vmatpush1.msra.mxu0 0.0
  %1537 = vmatprep.subr.mxu0 0.0
  %1538 = vmatpush1.msra.mxu0 0.0
  %1539 = vmatprep.subr.mxu0 0.0
  %1540 = vmatpush1.msra.mxu0 0.0
  %1541 = vmatprep.subr.mxu0 0.0
  %1542 = vmatpush1.msra.mxu0 0.0
  %1543 = vmatprep.subr.mxu0 0.0
  %1544 = vmatpush1.msra.mxu0 0.0
  %1545 = vmatprep.mubr.f32.mxu0 0.0
  %1546 = vmatmul.mubr.f32.gmra.mrb[0].mxu0 %v1479
  %v1547 = vpop.f32.mrb[0].mxu0
  %v1548 = vadd.f32 0.0, %v1547
  %v1549 = vpop.f32.mrb[0].mxu0
  %1550 = vdwg.mxu0
  %v1551 = vlaneseq
  %v1552 = vshrl.u32 %v1551, 7
  %v1553 = vsub.s32 0, %v1552
  %v1554 = vrot.slane %v1475, %v1553
  %v1555 = vmul.f32 %v1145, %v1554
  %v1556 = vlaneseq
  %v1557 = vshrl.u32 %v1556, 7
  %v1558 = vsub.s32 0, %v1557
  %v1559 = vrot.slane %v1548, %v1558
  %v1560 = vadd.f32 %v1555, %v1559
  %v1561 = vmax.f32 %v1560, 0.0
  %1562 = vst.msk [vmem:[%s10] sm:$0xf] %vm1146, %v1561
  // Predicated region
  $region42: #{encoder_block_forward.1} parent=0 // pred_check
    _
  $region43: #{encoder_block_forward.1} parent=0 // pred_check_branch
    %1564 = sbr.rel (0) target = $region45
  $region44: #{encoder_block_forward.1} parent=0 // pred_region
    _
  $region45: #{encoder_block_forward.1} parent=0 // pred_fallthru
    _
  // Predicated region
  $region46: #{encoder_block_forward.1} parent=0 // pred_check
    _
  $region47: #{encoder_block_forward.1} parent=0 // pred_check_branch
    %1566 = sbr.rel (0) target = $region49
  $region48: #{encoder_block_forward.1} parent=0 // pred_region
    _
  $region49: #{encoder_block_forward.1} parent=0 // pred_fallthru
    _

</llo_original>
